<compile_context>
chip_gen: v6e
topology: v6e:2x2x1
jax: 0.10.0
libtpu: 0.0.40
codegen_flags: <defaults>
</compile_context>

<pallas_src>
import functools
import math

import jax
import jax.numpy as jnp
from jax.experimental import pallas as pl
from jax.experimental.pallas import tpu as pltpu


@functools.lru_cache(maxsize=None)
def _vmem_limit_bytes():
    """Generation-aware scoped-VMEM request."""
    try:
        cap = pltpu.get_tpu_info().vmem_capacity_bytes
    except Exception:  # conservative fallback if the query is unavailable
        cap = 64 * 1024 * 1024
    return int(max(32 * 1024 * 1024,
                   min(cap - 16 * 1024 * 1024, 100 * 1024 * 1024)))


# ---------------------------------------------------------------------------
# In-kernel helpers
# ---------------------------------------------------------------------------
def _layer_norm(x, w, b, eps=1e-5):
    # x: (T, C) f32, w/b: (1, C) f32 — biased variance, matches torch LayerNorm.
    mu = jnp.mean(x, axis=-1, keepdims=True)
    var = jnp.mean(jnp.square(x - mu), axis=-1, keepdims=True)
    return (x - mu) * jax.lax.rsqrt(var + eps) * w + b


def _gelu_exact(x):
    # torch.nn.GELU() default = exact (erf-based) GELU.
    return 0.5 * x * (1.0 + jax.lax.erf(x * (1.0 / math.sqrt(2.0))))


def _nt_dot(a, b):
    # (M, K) x (N, K) -> (M, N), contracting the last dim of both (no transpose).
    return jax.lax.dot_general(a, b, (((1,), (1,)), ((), ())),
                               preferred_element_type=jnp.float32)


# ---------------------------------------------------------------------------
# Kernel 1: one fused TransformerBlock (per-batch-element grid program)
# ---------------------------------------------------------------------------
def _block_kernel(n_head,
                  x_ref,                          # (1, T, C) f32
                  ln1w_ref, ln1b_ref,             # (1, C) f32
                  wqkv_ref,                       # (C, 3C) bf16
                  wo_ref, bo_ref,                 # (C, C) bf16, (1, C) f32
                  ln2w_ref, ln2b_ref,             # (1, C) f32
                  wfc_ref, bfc_ref,               # (C, 4C) bf16, (1, 4C) f32
                  wpr_ref, bpr_ref,               # (4C, C) bf16, (1, C) f32
                  out_ref):                       # (1, T, C) f32
    x = x_ref[0]                                  # (T, C) f32 residual stream
    T, C = x.shape
    hd = C // n_head
    scale = 1.0 / math.sqrt(hd)

    # Causal mask built in-kernel (cheap VPU iota/compare hidden under the MXU)
    # instead of streaming a dense (T, T) f32 mask from HBM every layer.
    row = jax.lax.broadcasted_iota(jnp.int32, (T, T), 0)
    col = jax.lax.broadcasted_iota(jnp.int32, (T, T), 1)
    causal = col <= row

    # ---- attention sub-block: x + attn(ln_1(x)) ----
    h = _layer_norm(x, ln1w_ref[...], ln1b_ref[...]).astype(jnp.bfloat16)
    qkv = jnp.dot(h, wqkv_ref[...], preferred_element_type=jnp.float32)   # (T, 3C)

    wo = wo_ref[...]                                                       # (C, C) bf16
    att_acc = jnp.zeros((T, C), jnp.float32)
    # TODO(synk): at realistic C/T, process heads in 128-lane groups (batched
    # dot_general) inside a fori_loop to bound live ranges, and add a
    # flash-style query-tile grid axis (online softmax + causal tile skipping)
    # so the (T, T) score matrix never has to be fully live.
    for hi in range(n_head):
        lo, hi_ = hi * hd, (hi + 1) * hd
        # fold 1/sqrt(hd) into q (T*hd mults instead of T*T)
        qh = (qkv[:, lo:hi_] * scale).astype(jnp.bfloat16)                 # (T, hd)
        kh = qkv[:, C + lo:C + hi_].astype(jnp.bfloat16)                   # (T, hd)
        vh = qkv[:, 2 * C + lo:2 * C + hi_].astype(jnp.bfloat16)           # (T, hd)
        s = _nt_dot(qh, kh)                                                # (T, T) f32
        s = jnp.where(causal, s, -1e30)
        s = s - jnp.max(s, axis=-1, keepdims=True)
        p = jnp.exp(s)
        p = p * pl.reciprocal(jnp.sum(p, axis=-1, keepdims=True), approx=True)
        oh = jnp.dot(p.astype(jnp.bfloat16), vh,
                     preferred_element_type=jnp.float32)                   # (T, hd) f32
        # project this head's output through its W_o row-slice and accumulate
        # (avoids concatenate + relayout of all head outputs)
        att_acc = att_acc + jnp.dot(oh.astype(jnp.bfloat16), wo[lo:hi_, :],
                                    preferred_element_type=jnp.float32)
    x = x + att_acc + bo_ref[...]

    # ---- MLP sub-block: x + mlp(ln_2(x)) ----
    h2 = _layer_norm(x, ln2w_ref[...], ln2b_ref[...]).astype(jnp.bfloat16)
    f = jnp.dot(h2, wfc_ref[...], preferred_element_type=jnp.float32) + bfc_ref[...]
    f = _gelu_exact(f).astype(jnp.bfloat16)
    m = jnp.dot(f, wpr_ref[...], preferred_element_type=jnp.float32) + bpr_ref[...]

    out_ref[0] = x + m


def transformer_block(x, p, n_head):
    B, T, C = x.shape
    H = 4 * C

    def full2(a, b):   # full-array weight spec (rank 2, grid-invariant block)
        # TODO(synk): mark these constant-index weight blocks
        # pipeline_mode=pl.Buffered(1) (single-buffer) once confirmed on the
        # target jax version; recovers ~12*C^2*2 bytes of VMEM on v7x.
        return pl.BlockSpec((a, b), lambda i: (0, 0))

    return pl.pallas_call(
        functools.partial(_block_kernel, n_head),
        out_shape=jax.ShapeDtypeStruct((B, T, C), jnp.float32),
        grid=(B,),
        in_specs=[
            pl.BlockSpec((1, T, C), lambda i: (i, 0, 0)),   # x
            full2(1, C), full2(1, C),                       # ln_1 w, b
            full2(C, 3 * C),                                # c_attn weight (bf16)
            full2(C, C), full2(1, C),                       # attn c_proj w (bf16), b
            full2(1, C), full2(1, C),                       # ln_2 w, b
            full2(C, H), full2(1, H),                       # mlp c_fc w (bf16), b
            full2(H, C), full2(1, C),                       # mlp c_proj w (bf16), b
        ],
        out_specs=pl.BlockSpec((1, T, C), lambda i: (i, 0, 0)),
        compiler_params=pltpu.CompilerParams(
            dimension_semantics=("parallel",),
            vmem_limit_bytes=_vmem_limit_bytes()),
    )(x,
      p["ln1_w"], p["ln1_b"],
      p["w_qkv"],
      p["w_attn_proj"], p["b_attn_proj"],
      p["ln2_w"], p["ln2_b"],
      p["w_fc"], p["b_fc"],
      p["w_mlp_proj"], p["b_mlp_proj"])


# ---------------------------------------------------------------------------
# Kernel 2: final LayerNorm -> bf16 (done once, not once per vocab tile)
# ---------------------------------------------------------------------------
def _lnf_kernel(x_ref, w_ref, b_ref, o_ref):
    o_ref[0] = _layer_norm(x_ref[0], w_ref[...], b_ref[...]).astype(jnp.bfloat16)


def final_layer_norm_bf16(x, w, b):
    B, T, C = x.shape
    return pl.pallas_call(
        _lnf_kernel,
        out_shape=jax.ShapeDtypeStruct((B, T, C), jnp.bfloat16),
        grid=(B,),
        in_specs=[
            pl.BlockSpec((1, T, C), lambda i: (i, 0, 0)),
            pl.BlockSpec((1, C), lambda i: (0, 0)),
            pl.BlockSpec((1, C), lambda i: (0, 0)),
        ],
        out_specs=pl.BlockSpec((1, T, C), lambda i: (i, 0, 0)),
        compiler_params=pltpu.CompilerParams(
            dimension_semantics=("parallel",),
            vmem_limit_bytes=_vmem_limit_bytes()),
    )(x, w, b)


# ---------------------------------------------------------------------------
# Kernel 3: lm_head (tied to wte), pure NT matmul, tiled over the vocab.
# Grid is (vocab_tiles, batch) with batch innermost so the (TV, C) weight
# tile's block index is constant across consecutive steps -> fetched once.
# ---------------------------------------------------------------------------
def _head_kernel(h_ref, w_ref, out_ref):
    # h_ref: (1, T, C) bf16; w_ref: (TV, C) bf16 tied-embedding tile.
    out_ref[0] = _nt_dot(h_ref[0], w_ref[...])          # (T, TV) f32 logits


def _round_up(x, m):
    return (x + m - 1) // m * m


def _pick_vocab_tile(V, T, C, vmem_budget):
    tv = 2048
    while tv > 128:
        # double-buffered weight tile + double-buffered logits tile + h tiles
        need = 2 * tv * C * 2 + 2 * T * tv * 4 + 2 * T * C * 2
        if need <= vmem_budget:
            break
        tv //= 2
    return min(tv, _round_up(V, 128))


def lm_head(h_bf16, wte_bf):
    B, T, C = h_bf16.shape
    V = wte_bf.shape[0]
    TV = _pick_vocab_tile(V, T, C, int(_vmem_limit_bytes() * 0.7))
    V_pad = _round_up(V, TV)
    w = wte_bf if V_pad == V else jnp.pad(wte_bf, ((0, V_pad - V), (0, 0)))
    return pl.pallas_call(
        _head_kernel,
        out_shape=jax.ShapeDtypeStruct((B, T, V), jnp.float32),
        grid=(V_pad // TV, B),                           # vocab outer, batch inner
        in_specs=[
            pl.BlockSpec((1, T, C), lambda j, b: (b, 0, 0)),
            pl.BlockSpec((TV, C), lambda j, b: (j, 0)),  # weight index ignores b
        ],
        out_specs=pl.BlockSpec((1, T, TV), lambda j, b: (b, 0, j)),
        compiler_params=pltpu.CompilerParams(
            dimension_semantics=("parallel", "arbitrary"),
            vmem_limit_bytes=_vmem_limit_bytes()),
    )(h_bf16, w)


# ---------------------------------------------------------------------------
# Full GPT forward (targets=None, pos_ids=None path: plain causal mask)
# ---------------------------------------------------------------------------
# TODO(synk): packed-document attention mask (pos_ids path), cross-entropy loss
# (targets path) and generate() sampling are not exercised here.
# TODO(synk): cross-call prefetch of layer l+1 weights (or emit_pipeline fusion
# of the layer loop) to hide the per-layer weight DMA behind compute.
def gpt_forward(ids, params, n_head):
    B, T = ids.shape
    tok_emb = jnp.take(params["wte"], ids, axis=0)              # (B, T, C) f32
    pos_emb = params["wpe"][:T]                                 # (T, C) f32
    x = tok_emb + pos_emb[None, :, :]

    for blk in params["blocks"]:
        x = transformer_block(x, blk, n_head)

    h = final_layer_norm_bf16(x, params["lnf_w"], params["lnf_b"])
    # lm_head weight tied to wte; consumed untransposed (NT dot) in bf16.
    return lm_head(h, params["wte_bf"])


# ---------------------------------------------------------------------------
# Deterministic parameter init (mirrors GPT._init_weights)
# ---------------------------------------------------------------------------
def init_params(key, vocab_size, block_size, n_embed, n_layer):
    std = n_embed ** (-0.5)
    res_std = std * (2 * n_layer) ** (-0.5)
    C, H = n_embed, 4 * n_embed

    def normal(k, shape, s, dtype=jnp.float32):
        return (s * jax.random.normal(k, shape, dtype=jnp.float32)).astype(dtype)

    keys = jax.random.split(key, 2 + 4 * n_layer)
    wte = normal(keys[0], (vocab_size, C), std)                  # tied with lm_head
    params = {
        "wte": wte,                                              # f32 for embedding gather
        "wte_bf": wte.astype(jnp.bfloat16),                      # bf16 copy for lm_head MXU
        "wpe": normal(keys[1], (block_size, C), std),
        "lnf_w": jnp.ones((1, C), jnp.float32),
        "lnf_b": jnp.zeros((1, C), jnp.float32),
        "blocks": [],
    }
    for l in range(n_layer):
        k0, k1, k2, k3 = keys[2 + 4 * l: 6 + 4 * l]
        params["blocks"].append({
            "ln1_w": jnp.ones((1, C), jnp.float32),
            "ln1_b": jnp.zeros((1, C), jnp.float32),
            "w_qkv": normal(k0, (C, 3 * C), std, jnp.bfloat16),          # c_attn (no bias)
            "w_attn_proj": normal(k1, (C, C), res_std, jnp.bfloat16),    # RESIDUAL_LAYER
            "b_attn_proj": jnp.zeros((1, C), jnp.float32),
            "ln2_w": jnp.ones((1, C), jnp.float32),
            "ln2_b": jnp.zeros((1, C), jnp.float32),
            "w_fc": normal(k2, (C, H), std, jnp.bfloat16),
            "b_fc": jnp.zeros((1, H), jnp.float32),
            "w_mlp_proj": normal(k3, (H, C), res_std, jnp.bfloat16),     # RESIDUAL_LAYER
            "b_mlp_proj": jnp.zeros((1, C), jnp.float32),
        })
    return params


if __name__ == "__main__":
    # small config
    vocab_size, block_size, n_embed, n_head, n_layer = 128, 16, 32, 4, 2
    B, T = 2, 8

    key = jax.random.PRNGKey(0)
    k_params, k_ids = jax.random.split(key)
    params = init_params(k_params, vocab_size, block_size, n_embed, n_layer)
    ids = jax.random.randint(k_ids, (B, T), 0, vocab_size, dtype=jnp.int32)

    logits = gpt_forward(ids, params, n_head)
    logits = jax.block_until_ready(logits)

    assert logits.shape == (B, T, vocab_size), logits.shape
    assert logits.dtype == jnp.float32
    assert bool(jnp.all(jnp.isfinite(logits)))
    print("KERNEL_OK")
</pallas_src>

<mosaic_0001>
module attributes {stable_mosaic.version = 11 : i64} {
  func.func @_block_kernel(%arg0: i32, %arg1: memref<1x8x32xf32, #tpu.memory_space<vmem>>, %arg2: memref<1x32xf32, #tpu.memory_space<vmem>>, %arg3: memref<1x32xf32, #tpu.memory_space<vmem>>, %arg4: memref<32x96xbf16, #tpu.memory_space<vmem>>, %arg5: memref<32x32xbf16, #tpu.memory_space<vmem>>, %arg6: memref<1x32xf32, #tpu.memory_space<vmem>>, %arg7: memref<1x32xf32, #tpu.memory_space<vmem>>, %arg8: memref<1x32xf32, #tpu.memory_space<vmem>>, %arg9: memref<32x128xbf16, #tpu.memory_space<vmem>>, %arg10: memref<1x128xf32, #tpu.memory_space<vmem>>, %arg11: memref<128x32xbf16, #tpu.memory_space<vmem>>, %arg12: memref<1x32xf32, #tpu.memory_space<vmem>>, %arg13: memref<1x8x32xf32, #tpu.memory_space<vmem>>) attributes {dimension_semantics = [#tpu.dimension_semantics<parallel>], iteration_bounds = array<i64: 2>, scalar_prefetch = 0 : i64, scratch_operands = 0 : i64, tpu.core_type = #tpu.core_type<tc>, window_params = [{transform_indices = @transform_0, window_bounds = array<i64: 1, 8, 32>}, {pipeline_mode = #tpu.pipeline_mode<synchronous>, transform_indices = @transform_1, window_bounds = array<i64: 1, 32>}, {pipeline_mode = #tpu.pipeline_mode<synchronous>, transform_indices = @transform_2, window_bounds = array<i64: 1, 32>}, {pipeline_mode = #tpu.pipeline_mode<synchronous>, transform_indices = @transform_3, window_bounds = array<i64: 32, 96>}, {pipeline_mode = #tpu.pipeline_mode<synchronous>, transform_indices = @transform_4, window_bounds = array<i64: 32, 32>}, {pipeline_mode = #tpu.pipeline_mode<synchronous>, transform_indices = @transform_5, window_bounds = array<i64: 1, 32>}, {pipeline_mode = #tpu.pipeline_mode<synchronous>, transform_indices = @transform_6, window_bounds = array<i64: 1, 32>}, {pipeline_mode = #tpu.pipeline_mode<synchronous>, transform_indices = @transform_7, window_bounds = array<i64: 1, 32>}, {pipeline_mode = #tpu.pipeline_mode<synchronous>, transform_indices = @transform_8, window_bounds = array<i64: 32, 128>}, {pipeline_mode = #tpu.pipeline_mode<synchronous>, transform_indices = @transform_9, window_bounds = array<i64: 1, 128>}, {pipeline_mode = #tpu.pipeline_mode<synchronous>, transform_indices = @transform_10, window_bounds = array<i64: 128, 32>}, {pipeline_mode = #tpu.pipeline_mode<synchronous>, transform_indices = @transform_11, window_bounds = array<i64: 1, 32>}, {transform_indices = @transform_12, window_bounds = array<i64: 1, 8, 32>}]} {
    %c0 = arith.constant 0 : index
    %c0_0 = arith.constant 0 : index
    %c0_1 = arith.constant 0 : index
    %0 = vector.load %arg1[%c0, %c0_0, %c0_1] : memref<1x8x32xf32, #tpu.memory_space<vmem>>, vector<1x8x32xf32>
    %1 = vector.shape_cast %0 : vector<1x8x32xf32> to vector<8x32xf32>
    %2 = tpu.iota {dimensions = array<i32: 0>} : vector<8x8xi32>
    %3 = tpu.iota {dimensions = array<i32: 1>} : vector<8x8xi32>
    %4 = arith.cmpi sle, %3, %2 : vector<8x8xi32>
    %c0_2 = arith.constant 0 : index
    %c0_3 = arith.constant 0 : index
    %5 = vector.load %arg2[%c0_2, %c0_3] : memref<1x32xf32, #tpu.memory_space<vmem>>, vector<1x32xf32>
    %c0_4 = arith.constant 0 : index
    %c0_5 = arith.constant 0 : index
    %6 = vector.load %arg3[%c0_4, %c0_5] : memref<1x32xf32, #tpu.memory_space<vmem>>, vector<1x32xf32>
    %cst = arith.constant dense<0.000000e+00> : vector<8xf32>
    %7 = vector.multi_reduction <add>, %1, %cst [1] : vector<8x32xf32> to vector<8xf32>
    %8 = vector.shape_cast %7 : vector<8xf32> to vector<8x1xf32>
    %cst_6 = arith.constant 3.200000e+01 : f32
    %9 = vector.broadcast %cst_6 : f32 to vector<8x1xf32>
    %10 = arith.divf %8, %9 : vector<8x1xf32>
    %11 = vector.broadcast %10 : vector<8x1xf32> to vector<8x32xf32>
    %12 = arith.subf %1, %11 : vector<8x32xf32>
    %13 = arith.mulf %12, %12 : vector<8x32xf32>
    %cst_7 = arith.constant dense<0.000000e+00> : vector<8xf32>
    %14 = vector.multi_reduction <add>, %13, %cst_7 [1] : vector<8x32xf32> to vector<8xf32>
    %15 = vector.shape_cast %14 : vector<8xf32> to vector<8x1xf32>
    %cst_8 = arith.constant 3.200000e+01 : f32
    %16 = vector.broadcast %cst_8 : f32 to vector<8x1xf32>
    %17 = arith.divf %15, %16 : vector<8x1xf32>
    %18 = vector.broadcast %10 : vector<8x1xf32> to vector<8x32xf32>
    %19 = arith.subf %1, %18 : vector<8x32xf32>
    %cst_9 = arith.constant 9.99999974E-6 : f32
    %20 = vector.broadcast %cst_9 : f32 to vector<8x1xf32>
    %21 = arith.addf %17, %20 : vector<8x1xf32>
    %22 = math.rsqrt %21 : vector<8x1xf32>
    %23 = vector.broadcast %22 : vector<8x1xf32> to vector<8x32xf32>
    %24 = arith.mulf %19, %23 : vector<8x32xf32>
    %25 = vector.broadcast %5 : vector<1x32xf32> to vector<8x32xf32>
    %26 = arith.mulf %24, %25 : vector<8x32xf32>
    %27 = vector.broadcast %6 : vector<1x32xf32> to vector<8x32xf32>
    %28 = arith.addf %26, %27 : vector<8x32xf32>
    %29 = arith.truncf %28 : vector<8x32xf32> to vector<8x32xbf16>
    %c0_10 = arith.constant 0 : index
    %c0_11 = arith.constant 0 : index
    %30 = vector.load %arg4[%c0_10, %c0_11] : memref<32x96xbf16, #tpu.memory_space<vmem>>, vector<32x96xbf16>
    %cst_12 = arith.constant dense<0.000000e+00> : vector<8x96xf32>
    %31 = tpu.matmul %29, %30, %cst_12 {dimension_numbers = #tpu.dot_dimension_numbers<[1], [0], [0], [1], [0, 0, 1, 1], [], []>} : vector<8x32xbf16>, vector<32x96xbf16>, vector<8x96xf32> -> vector<8x96xf32>
    %c0_13 = arith.constant 0 : index
    %c0_14 = arith.constant 0 : index
    %32 = vector.load %arg5[%c0_13, %c0_14] : memref<32x32xbf16, #tpu.memory_space<vmem>>, vector<32x32xbf16>
    %cst_15 = arith.constant 0.000000e+00 : f32
    %33 = vector.broadcast %cst_15 : f32 to vector<8x32xf32>
    %34 = vector.extract_strided_slice %31 {offsets = [0, 0], sizes = [8, 8], strides = [1, 1]} : vector<8x96xf32> to vector<8x8xf32>
    %cst_16 = arith.constant 0.353553385 : f32
    %35 = vector.broadcast %cst_16 : f32 to vector<8x8xf32>
    %36 = arith.mulf %34, %35 : vector<8x8xf32>
    %37 = arith.truncf %36 : vector<8x8xf32> to vector<8x8xbf16>
    %38 = vector.extract_strided_slice %31 {offsets = [0, 32], sizes = [8, 8], strides = [1, 1]} : vector<8x96xf32> to vector<8x8xf32>
    %39 = arith.truncf %38 : vector<8x8xf32> to vector<8x8xbf16>
    %40 = vector.extract_strided_slice %31 {offsets = [0, 64], sizes = [8, 8], strides = [1, 1]} : vector<8x96xf32> to vector<8x8xf32>
    %41 = arith.truncf %40 : vector<8x8xf32> to vector<8x8xbf16>
    %cst_17 = arith.constant dense<0.000000e+00> : vector<8x8xf32>
    %42 = tpu.matmul %37, %39, %cst_17 {dimension_numbers = #tpu.dot_dimension_numbers<[1], [1], [0], [0], [0, 0, 1, 0], [], []>} : vector<8x8xbf16>, vector<8x8xbf16>, vector<8x8xf32> -> vector<8x8xf32>
    %cst_18 = arith.constant -1.000000e+30 : f32
    %43 = vector.broadcast %cst_18 : f32 to vector<8x8xf32>
    %44 = arith.select %4, %42, %43 : vector<8x8xi1>, vector<8x8xf32>
    %cst_19 = arith.constant dense<0xFF800000> : vector<8xf32>
    %45 = vector.multi_reduction <maximumf>, %44, %cst_19 [1] : vector<8x8xf32> to vector<8xf32>
    %46 = vector.shape_cast %45 : vector<8xf32> to vector<8x1xf32>
    %47 = vector.broadcast %46 : vector<8x1xf32> to vector<8x8xf32>
    %48 = arith.subf %44, %47 : vector<8x8xf32>
    %49 = math.exp %48 : vector<8x8xf32>
    %cst_20 = arith.constant dense<0.000000e+00> : vector<8xf32>
    %50 = vector.multi_reduction <add>, %49, %cst_20 [1] : vector<8x8xf32> to vector<8xf32>
    %51 = vector.shape_cast %50 : vector<8xf32> to vector<8x1xf32>
    %52 = tpu.reciprocal %51 {approx = true} : vector<8x1xf32> -> vector<8x1xf32>
    %53 = vector.broadcast %52 : vector<8x1xf32> to vector<8x8xf32>
    %54 = arith.mulf %49, %53 : vector<8x8xf32>
    %55 = arith.truncf %54 : vector<8x8xf32> to vector<8x8xbf16>
    %cst_21 = arith.constant dense<0.000000e+00> : vector<8x8xf32>
    %56 = tpu.matmul %55, %41, %cst_21 {dimension_numbers = #tpu.dot_dimension_numbers<[1], [0], [0], [1], [0, 0, 1, 1], [], []>} : vector<8x8xbf16>, vector<8x8xbf16>, vector<8x8xf32> -> vector<8x8xf32>
    %57 = arith.truncf %56 : vector<8x8xf32> to vector<8x8xbf16>
    %58 = vector.extract_strided_slice %32 {offsets = [0, 0], sizes = [8, 32], strides = [1, 1]} : vector<32x32xbf16> to vector<8x32xbf16>
    %cst_22 = arith.constant dense<0.000000e+00> : vector<8x32xf32>
    %59 = tpu.matmul %57, %58, %cst_22 {dimension_numbers = #tpu.dot_dimension_numbers<[1], [0], [0], [1], [0, 0, 1, 1], [], []>} : vector<8x8xbf16>, vector<8x32xbf16>, vector<8x32xf32> -> vector<8x32xf32>
    %60 = arith.addf %33, %59 : vector<8x32xf32>
    %61 = vector.extract_strided_slice %31 {offsets = [0, 8], sizes = [8, 8], strides = [1, 1]} : vector<8x96xf32> to vector<8x8xf32>
    %cst_23 = arith.constant 0.353553385 : f32
    %62 = vector.broadcast %cst_23 : f32 to vector<8x8xf32>
    %63 = arith.mulf %61, %62 : vector<8x8xf32>
    %64 = arith.truncf %63 : vector<8x8xf32> to vector<8x8xbf16>
    %65 = vector.extract_strided_slice %31 {offsets = [0, 40], sizes = [8, 8], strides = [1, 1]} : vector<8x96xf32> to vector<8x8xf32>
    %66 = arith.truncf %65 : vector<8x8xf32> to vector<8x8xbf16>
    %67 = vector.extract_strided_slice %31 {offsets = [0, 72], sizes = [8, 8], strides = [1, 1]} : vector<8x96xf32> to vector<8x8xf32>
    %68 = arith.truncf %67 : vector<8x8xf32> to vector<8x8xbf16>
    %cst_24 = arith.constant dense<0.000000e+00> : vector<8x8xf32>
    %69 = tpu.matmul %64, %66, %cst_24 {dimension_numbers = #tpu.dot_dimension_numbers<[1], [1], [0], [0], [0, 0, 1, 0], [], []>} : vector<8x8xbf16>, vector<8x8xbf16>, vector<8x8xf32> -> vector<8x8xf32>
    %cst_25 = arith.constant -1.000000e+30 : f32
    %70 = vector.broadcast %cst_25 : f32 to vector<8x8xf32>
    %71 = arith.select %4, %69, %70 : vector<8x8xi1>, vector<8x8xf32>
    %cst_26 = arith.constant dense<0xFF800000> : vector<8xf32>
    %72 = vector.multi_reduction <maximumf>, %71, %cst_26 [1] : vector<8x8xf32> to vector<8xf32>
    %73 = vector.shape_cast %72 : vector<8xf32> to vector<8x1xf32>
    %74 = vector.broadcast %73 : vector<8x1xf32> to vector<8x8xf32>
    %75 = arith.subf %71, %74 : vector<8x8xf32>
    %76 = math.exp %75 : vector<8x8xf32>
    %cst_27 = arith.constant dense<0.000000e+00> : vector<8xf32>
    %77 = vector.multi_reduction <add>, %76, %cst_27 [1] : vector<8x8xf32> to vector<8xf32>
    %78 = vector.shape_cast %77 : vector<8xf32> to vector<8x1xf32>
    %79 = tpu.reciprocal %78 {approx = true} : vector<8x1xf32> -> vector<8x1xf32>
    %80 = vector.broadcast %79 : vector<8x1xf32> to vector<8x8xf32>
    %81 = arith.mulf %76, %80 : vector<8x8xf32>
    %82 = arith.truncf %81 : vector<8x8xf32> to vector<8x8xbf16>
    %cst_28 = arith.constant dense<0.000000e+00> : vector<8x8xf32>
    %83 = tpu.matmul %82, %68, %cst_28 {dimension_numbers = #tpu.dot_dimension_numbers<[1], [0], [0], [1], [0, 0, 1, 1], [], []>} : vector<8x8xbf16>, vector<8x8xbf16>, vector<8x8xf32> -> vector<8x8xf32>
    %84 = arith.truncf %83 : vector<8x8xf32> to vector<8x8xbf16>
    %85 = vector.extract_strided_slice %32 {offsets = [8, 0], sizes = [8, 32], strides = [1, 1]} : vector<32x32xbf16> to vector<8x32xbf16>
    %cst_29 = arith.constant dense<0.000000e+00> : vector<8x32xf32>
    %86 = tpu.matmul %84, %85, %cst_29 {dimension_numbers = #tpu.dot_dimension_numbers<[1], [0], [0], [1], [0, 0, 1, 1], [], []>} : vector<8x8xbf16>, vector<8x32xbf16>, vector<8x32xf32> -> vector<8x32xf32>
    %87 = arith.addf %60, %86 : vector<8x32xf32>
    %88 = vector.extract_strided_slice %31 {offsets = [0, 16], sizes = [8, 8], strides = [1, 1]} : vector<8x96xf32> to vector<8x8xf32>
    %cst_30 = arith.constant 0.353553385 : f32
    %89 = vector.broadcast %cst_30 : f32 to vector<8x8xf32>
    %90 = arith.mulf %88, %89 : vector<8x8xf32>
    %91 = arith.truncf %90 : vector<8x8xf32> to vector<8x8xbf16>
    %92 = vector.extract_strided_slice %31 {offsets = [0, 48], sizes = [8, 8], strides = [1, 1]} : vector<8x96xf32> to vector<8x8xf32>
    %93 = arith.truncf %92 : vector<8x8xf32> to vector<8x8xbf16>
    %94 = vector.extract_strided_slice %31 {offsets = [0, 80], sizes = [8, 8], strides = [1, 1]} : vector<8x96xf32> to vector<8x8xf32>
    %95 = arith.truncf %94 : vector<8x8xf32> to vector<8x8xbf16>
    %cst_31 = arith.constant dense<0.000000e+00> : vector<8x8xf32>
    %96 = tpu.matmul %91, %93, %cst_31 {dimension_numbers = #tpu.dot_dimension_numbers<[1], [1], [0], [0], [0, 0, 1, 0], [], []>} : vector<8x8xbf16>, vector<8x8xbf16>, vector<8x8xf32> -> vector<8x8xf32>
    %cst_32 = arith.constant -1.000000e+30 : f32
    %97 = vector.broadcast %cst_32 : f32 to vector<8x8xf32>
    %98 = arith.select %4, %96, %97 : vector<8x8xi1>, vector<8x8xf32>
    %cst_33 = arith.constant dense<0xFF800000> : vector<8xf32>
    %99 = vector.multi_reduction <maximumf>, %98, %cst_33 [1] : vector<8x8xf32> to vector<8xf32>
    %100 = vector.shape_cast %99 : vector<8xf32> to vector<8x1xf32>
    %101 = vector.broadcast %100 : vector<8x1xf32> to vector<8x8xf32>
    %102 = arith.subf %98, %101 : vector<8x8xf32>
    %103 = math.exp %102 : vector<8x8xf32>
    %cst_34 = arith.constant dense<0.000000e+00> : vector<8xf32>
    %104 = vector.multi_reduction <add>, %103, %cst_34 [1] : vector<8x8xf32> to vector<8xf32>
    %105 = vector.shape_cast %104 : vector<8xf32> to vector<8x1xf32>
    %106 = tpu.reciprocal %105 {approx = true} : vector<8x1xf32> -> vector<8x1xf32>
    %107 = vector.broadcast %106 : vector<8x1xf32> to vector<8x8xf32>
    %108 = arith.mulf %103, %107 : vector<8x8xf32>
    %109 = arith.truncf %108 : vector<8x8xf32> to vector<8x8xbf16>
    %cst_35 = arith.constant dense<0.000000e+00> : vector<8x8xf32>
    %110 = tpu.matmul %109, %95, %cst_35 {dimension_numbers = #tpu.dot_dimension_numbers<[1], [0], [0], [1], [0, 0, 1, 1], [], []>} : vector<8x8xbf16>, vector<8x8xbf16>, vector<8x8xf32> -> vector<8x8xf32>
    %111 = arith.truncf %110 : vector<8x8xf32> to vector<8x8xbf16>
    %112 = vector.extract_strided_slice %32 {offsets = [16, 0], sizes = [8, 32], strides = [1, 1]} : vector<32x32xbf16> to vector<8x32xbf16>
    %cst_36 = arith.constant dense<0.000000e+00> : vector<8x32xf32>
    %113 = tpu.matmul %111, %112, %cst_36 {dimension_numbers = #tpu.dot_dimension_numbers<[1], [0], [0], [1], [0, 0, 1, 1], [], []>} : vector<8x8xbf16>, vector<8x32xbf16>, vector<8x32xf32> -> vector<8x32xf32>
    %114 = arith.addf %87, %113 : vector<8x32xf32>
    %115 = vector.extract_strided_slice %31 {offsets = [0, 24], sizes = [8, 8], strides = [1, 1]} : vector<8x96xf32> to vector<8x8xf32>
    %cst_37 = arith.constant 0.353553385 : f32
    %116 = vector.broadcast %cst_37 : f32 to vector<8x8xf32>
    %117 = arith.mulf %115, %116 : vector<8x8xf32>
    %118 = arith.truncf %117 : vector<8x8xf32> to vector<8x8xbf16>
    %119 = vector.extract_strided_slice %31 {offsets = [0, 56], sizes = [8, 8], strides = [1, 1]} : vector<8x96xf32> to vector<8x8xf32>
    %120 = arith.truncf %119 : vector<8x8xf32> to vector<8x8xbf16>
    %121 = vector.extract_strided_slice %31 {offsets = [0, 88], sizes = [8, 8], strides = [1, 1]} : vector<8x96xf32> to vector<8x8xf32>
    %122 = arith.truncf %121 : vector<8x8xf32> to vector<8x8xbf16>
    %cst_38 = arith.constant dense<0.000000e+00> : vector<8x8xf32>
    %123 = tpu.matmul %118, %120, %cst_38 {dimension_numbers = #tpu.dot_dimension_numbers<[1], [1], [0], [0], [0, 0, 1, 0], [], []>} : vector<8x8xbf16>, vector<8x8xbf16>, vector<8x8xf32> -> vector<8x8xf32>
    %cst_39 = arith.constant -1.000000e+30 : f32
    %124 = vector.broadcast %cst_39 : f32 to vector<8x8xf32>
    %125 = arith.select %4, %123, %124 : vector<8x8xi1>, vector<8x8xf32>
    %cst_40 = arith.constant dense<0xFF800000> : vector<8xf32>
    %126 = vector.multi_reduction <maximumf>, %125, %cst_40 [1] : vector<8x8xf32> to vector<8xf32>
    %127 = vector.shape_cast %126 : vector<8xf32> to vector<8x1xf32>
    %128 = vector.broadcast %127 : vector<8x1xf32> to vector<8x8xf32>
    %129 = arith.subf %125, %128 : vector<8x8xf32>
    %130 = math.exp %129 : vector<8x8xf32>
    %cst_41 = arith.constant dense<0.000000e+00> : vector<8xf32>
    %131 = vector.multi_reduction <add>, %130, %cst_41 [1] : vector<8x8xf32> to vector<8xf32>
    %132 = vector.shape_cast %131 : vector<8xf32> to vector<8x1xf32>
    %133 = tpu.reciprocal %132 {approx = true} : vector<8x1xf32> -> vector<8x1xf32>
    %134 = vector.broadcast %133 : vector<8x1xf32> to vector<8x8xf32>
    %135 = arith.mulf %130, %134 : vector<8x8xf32>
    %136 = arith.truncf %135 : vector<8x8xf32> to vector<8x8xbf16>
    %cst_42 = arith.constant dense<0.000000e+00> : vector<8x8xf32>
    %137 = tpu.matmul %136, %122, %cst_42 {dimension_numbers = #tpu.dot_dimension_numbers<[1], [0], [0], [1], [0, 0, 1, 1], [], []>} : vector<8x8xbf16>, vector<8x8xbf16>, vector<8x8xf32> -> vector<8x8xf32>
    %138 = arith.truncf %137 : vector<8x8xf32> to vector<8x8xbf16>
    %139 = vector.extract_strided_slice %32 {offsets = [24, 0], sizes = [8, 32], strides = [1, 1]} : vector<32x32xbf16> to vector<8x32xbf16>
    %cst_43 = arith.constant dense<0.000000e+00> : vector<8x32xf32>
    %140 = tpu.matmul %138, %139, %cst_43 {dimension_numbers = #tpu.dot_dimension_numbers<[1], [0], [0], [1], [0, 0, 1, 1], [], []>} : vector<8x8xbf16>, vector<8x32xbf16>, vector<8x32xf32> -> vector<8x32xf32>
    %141 = arith.addf %114, %140 : vector<8x32xf32>
    %142 = arith.addf %1, %141 : vector<8x32xf32>
    %c0_44 = arith.constant 0 : index
    %c0_45 = arith.constant 0 : index
    %143 = vector.load %arg6[%c0_44, %c0_45] : memref<1x32xf32, #tpu.memory_space<vmem>>, vector<1x32xf32>
    %144 = vector.broadcast %143 : vector<1x32xf32> to vector<8x32xf32>
    %145 = arith.addf %142, %144 : vector<8x32xf32>
    %c0_46 = arith.constant 0 : index
    %c0_47 = arith.constant 0 : index
    %146 = vector.load %arg7[%c0_46, %c0_47] : memref<1x32xf32, #tpu.memory_space<vmem>>, vector<1x32xf32>
    %c0_48 = arith.constant 0 : index
    %c0_49 = arith.constant 0 : index
    %147 = vector.load %arg8[%c0_48, %c0_49] : memref<1x32xf32, #tpu.memory_space<vmem>>, vector<1x32xf32>
    %cst_50 = arith.constant dense<0.000000e+00> : vector<8xf32>
    %148 = vector.multi_reduction <add>, %145, %cst_50 [1] : vector<8x32xf32> to vector<8xf32>
    %149 = vector.shape_cast %148 : vector<8xf32> to vector<8x1xf32>
    %cst_51 = arith.constant 3.200000e+01 : f32
    %150 = vector.broadcast %cst_51 : f32 to vector<8x1xf32>
    %151 = arith.divf %149, %150 : vector<8x1xf32>
    %152 = vector.broadcast %151 : vector<8x1xf32> to vector<8x32xf32>
    %153 = arith.subf %145, %152 : vector<8x32xf32>
    %154 = arith.mulf %153, %153 : vector<8x32xf32>
    %cst_52 = arith.constant dense<0.000000e+00> : vector<8xf32>
    %155 = vector.multi_reduction <add>, %154, %cst_52 [1] : vector<8x32xf32> to vector<8xf32>
    %156 = vector.shape_cast %155 : vector<8xf32> to vector<8x1xf32>
    %cst_53 = arith.constant 3.200000e+01 : f32
    %157 = vector.broadcast %cst_53 : f32 to vector<8x1xf32>
    %158 = arith.divf %156, %157 : vector<8x1xf32>
    %159 = vector.broadcast %151 : vector<8x1xf32> to vector<8x32xf32>
    %160 = arith.subf %145, %159 : vector<8x32xf32>
    %cst_54 = arith.constant 9.99999974E-6 : f32
    %161 = vector.broadcast %cst_54 : f32 to vector<8x1xf32>
    %162 = arith.addf %158, %161 : vector<8x1xf32>
    %163 = math.rsqrt %162 : vector<8x1xf32>
    %164 = vector.broadcast %163 : vector<8x1xf32> to vector<8x32xf32>
    %165 = arith.mulf %160, %164 : vector<8x32xf32>
    %166 = vector.broadcast %146 : vector<1x32xf32> to vector<8x32xf32>
    %167 = arith.mulf %165, %166 : vector<8x32xf32>
    %168 = vector.broadcast %147 : vector<1x32xf32> to vector<8x32xf32>
    %169 = arith.addf %167, %168 : vector<8x32xf32>
    %170 = arith.truncf %169 : vector<8x32xf32> to vector<8x32xbf16>
    %c0_55 = arith.constant 0 : index
    %c0_56 = arith.constant 0 : index
    %171 = vector.load %arg9[%c0_55, %c0_56] : memref<32x128xbf16, #tpu.memory_space<vmem>>, vector<32x128xbf16>
    %cst_57 = arith.constant dense<0.000000e+00> : vector<8x128xf32>
    %172 = tpu.matmul %170, %171, %cst_57 {dimension_numbers = #tpu.dot_dimension_numbers<[1], [0], [0], [1], [0, 0, 1, 1], [], []>} : vector<8x32xbf16>, vector<32x128xbf16>, vector<8x128xf32> -> vector<8x128xf32>
    %c0_58 = arith.constant 0 : index
    %c0_59 = arith.constant 0 : index
    %173 = vector.load %arg10[%c0_58, %c0_59] : memref<1x128xf32, #tpu.memory_space<vmem>>, vector<1x128xf32>
    %174 = vector.broadcast %173 : vector<1x128xf32> to vector<8x128xf32>
    %175 = arith.addf %172, %174 : vector<8x128xf32>
    %cst_60 = arith.constant 5.000000e-01 : f32
    %176 = vector.broadcast %cst_60 : f32 to vector<8x128xf32>
    %177 = arith.mulf %176, %175 : vector<8x128xf32>
    %cst_61 = arith.constant 0.707106769 : f32
    %178 = vector.broadcast %cst_61 : f32 to vector<8x128xf32>
    %179 = arith.mulf %175, %178 : vector<8x128xf32>
    %180 = math.erf %179 : vector<8x128xf32>
    %cst_62 = arith.constant 1.000000e+00 : f32
    %181 = vector.broadcast %cst_62 : f32 to vector<8x128xf32>
    %182 = arith.addf %181, %180 : vector<8x128xf32>
    %183 = arith.mulf %177, %182 : vector<8x128xf32>
    %184 = arith.truncf %183 : vector<8x128xf32> to vector<8x128xbf16>
    %c0_63 = arith.constant 0 : index
    %c0_64 = arith.constant 0 : index
    %185 = vector.load %arg11[%c0_63, %c0_64] : memref<128x32xbf16, #tpu.memory_space<vmem>>, vector<128x32xbf16>
    %cst_65 = arith.constant dense<0.000000e+00> : vector<8x32xf32>
    %186 = tpu.matmul %184, %185, %cst_65 {dimension_numbers = #tpu.dot_dimension_numbers<[1], [0], [0], [1], [0, 0, 1, 1], [], []>} : vector<8x128xbf16>, vector<128x32xbf16>, vector<8x32xf32> -> vector<8x32xf32>
    %c0_66 = arith.constant 0 : index
    %c0_67 = arith.constant 0 : index
    %187 = vector.load %arg12[%c0_66, %c0_67] : memref<1x32xf32, #tpu.memory_space<vmem>>, vector<1x32xf32>
    %188 = vector.broadcast %187 : vector<1x32xf32> to vector<8x32xf32>
    %189 = arith.addf %186, %188 : vector<8x32xf32>
    %190 = arith.addf %145, %189 : vector<8x32xf32>
    %c0_68 = arith.constant 0 : index
    %c0_69 = arith.constant 0 : index
    %c0_70 = arith.constant 0 : index
    %191 = vector.load %arg13[%c0_68, %c0_69, %c0_70] : memref<1x8x32xf32, #tpu.memory_space<vmem>>, vector<1x8x32xf32>
    %192 = vector.shape_cast %191 : vector<1x8x32xf32> to vector<8x32xf32>
    %193 = vector.shape_cast %190 : vector<8x32xf32> to vector<1x8x32xf32>
    tpu.vector_store %arg13[%c0_68, %c0_69, %c0_70], %193 {strides = array<i32>} : memref<1x8x32xf32, #tpu.memory_space<vmem>>, vector<1x8x32xf32>,
    return
  }
  func.func @transform_0(%arg0: i32) -> (i32, i32, i32) {
    %c0_i32 = arith.constant 0 : i32
    %c0_i32_0 = arith.constant 0 : i32
    %c0_i32_1 = arith.constant 0 : i32
    return %arg0, %c0_i32, %c0_i32_0 : i32, i32, i32
  }
  func.func @transform_1(%arg0: i32) -> (i32, i32) {
    %c0_i32 = arith.constant 0 : i32
    %c0_i32_0 = arith.constant 0 : i32
    %c0_i32_1 = arith.constant 0 : i32
    return %c0_i32, %c0_i32_0 : i32, i32
  }
  func.func @transform_2(%arg0: i32) -> (i32, i32) {
    %c0_i32 = arith.constant 0 : i32
    %c0_i32_0 = arith.constant 0 : i32
    %c0_i32_1 = arith.constant 0 : i32
    return %c0_i32, %c0_i32_0 : i32, i32
  }
  func.func @transform_3(%arg0: i32) -> (i32, i32) {
    %c0_i32 = arith.constant 0 : i32
    %c0_i32_0 = arith.constant 0 : i32
    %c0_i32_1 = arith.constant 0 : i32
    return %c0_i32, %c0_i32_0 : i32, i32
  }
  func.func @transform_4(%arg0: i32) -> (i32, i32) {
    %c0_i32 = arith.constant 0 : i32
    %c0_i32_0 = arith.constant 0 : i32
    %c0_i32_1 = arith.constant 0 : i32
    return %c0_i32, %c0_i32_0 : i32, i32
  }
  func.func @transform_5(%arg0: i32) -> (i32, i32) {
    %c0_i32 = arith.constant 0 : i32
    %c0_i32_0 = arith.constant 0 : i32
    %c0_i32_1 = arith.constant 0 : i32
    return %c0_i32, %c0_i32_0 : i32, i32
  }
  func.func @transform_6(%arg0: i32) -> (i32, i32) {
    %c0_i32 = arith.constant 0 : i32
    %c0_i32_0 = arith.constant 0 : i32
    %c0_i32_1 = arith.constant 0 : i32
    return %c0_i32, %c0_i32_0 : i32, i32
  }
  func.func @transform_7(%arg0: i32) -> (i32, i32) {
    %c0_i32 = arith.constant 0 : i32
    %c0_i32_0 = arith.constant 0 : i32
    %c0_i32_1 = arith.constant 0 : i32
    return %c0_i32, %c0_i32_0 : i32, i32
  }
  func.func @transform_8(%arg0: i32) -> (i32, i32) {
    %c0_i32 = arith.constant 0 : i32
    %c0_i32_0 = arith.constant 0 : i32
    %c0_i32_1 = arith.constant 0 : i32
    return %c0_i32, %c0_i32_0 : i32, i32
  }
  func.func @transform_9(%arg0: i32) -> (i32, i32) {
    %c0_i32 = arith.constant 0 : i32
    %c0_i32_0 = arith.constant 0 : i32
    %c0_i32_1 = arith.constant 0 : i32
    return %c0_i32, %c0_i32_0 : i32, i32
  }
  func.func @transform_10(%arg0: i32) -> (i32, i32) {
    %c0_i32 = arith.constant 0 : i32
    %c0_i32_0 = arith.constant 0 : i32
    %c0_i32_1 = arith.constant 0 : i32
    return %c0_i32, %c0_i32_0 : i32, i32
  }
  func.func @transform_11(%arg0: i32) -> (i32, i32) {
    %c0_i32 = arith.constant 0 : i32
    %c0_i32_0 = arith.constant 0 : i32
    %c0_i32_1 = arith.constant 0 : i32
    return %c0_i32, %c0_i32_0 : i32, i32
  }
  func.func @transform_12(%arg0: i32) -> (i32, i32, i32) {
    %c0_i32 = arith.constant 0 : i32
    %c0_i32_0 = arith.constant 0 : i32
    %c0_i32_1 = arith.constant 0 : i32
    return %arg0, %c0_i32, %c0_i32_0 : i32, i32, i32
  }
}

</mosaic_0001>

<llo_original>
// kernel: tpu_custom_call.1
$region0: #{tpu_custom_call.1}
  #allocation0 [shape = 'u32[]', space=smem, size = 0x4, offset = 0x4, fixed_abs, tag = 'smem constant byte address 0x4 - core index']
  #allocation1 [shape = 'u32[144,128]{1,0:T(1,128)}', space=vmem, size = 0x12000, scoped, tag = 'internal scratch']
  %s0 = inlined_call_operand.vmem [shape: f32[2,8,32], index: 0, kind: input, shape index: {}]
  %s1 = inlined_call_operand.vmem [shape: f32[1,32], index: 1, kind: input, shape index: {}]
  %s2 = inlined_call_operand.vmem [shape: f32[1,32], index: 2, kind: input, shape index: {}]
  %s3 = inlined_call_operand.vmem [shape: bf16[32,96], index: 3, kind: input, shape index: {}]
  %s4 = inlined_call_operand.vmem [shape: bf16[32,32], index: 4, kind: input, shape index: {}]
  %s5 = inlined_call_operand.vmem [shape: f32[1,32], index: 5, kind: input, shape index: {}]
  %s6 = inlined_call_operand.vmem [shape: f32[1,32], index: 6, kind: input, shape index: {}]
  %s7 = inlined_call_operand.vmem [shape: f32[1,32], index: 7, kind: input, shape index: {}]
  %s8 = inlined_call_operand.vmem [shape: bf16[32,128], index: 8, kind: input, shape index: {}]
  %s9 = inlined_call_operand.vmem [shape: f32[1,128], index: 9, kind: input, shape index: {}]
  %s10 = inlined_call_operand.vmem [shape: bf16[128,32], index: 10, kind: input, shape index: {}]
  %s11 = inlined_call_operand.vmem [shape: f32[1,32], index: 11, kind: input, shape index: {}]
  %s12 = inlined_call_operand.hbm [shape: f32[2,8,32], index: 12, kind: output, shape index: {}]
  %s13 = sld [smem:[#allocation0]]
  $region81: #{tpu_custom_call.1} parent=0
    _
  %s15 = ssub.s32 1, %s13
  %s16 = scalar_select 0, %s15, %s13
  $region1: #{tpu_custom_call.1} parent=0
    #allocation2 [shape = 'u8[8192]{0}', space=vmem, size = 0x2000, scoped, tag = 'output window, operand 0']
    #allocation3 [shape = 's32[2]{0}', space=sflag, size = 0x8, scoped, tag = 'scoped memory for tpu_custom_call.1']
    %17 = vsyncpa [#allocation3], 0
    %s18 = scalar_lea.sflag [#allocation3], 1
    %19 = vsyncpa %s18, 0
    loop: start=0, step=1, limit=4
    $region2: #{tpu_custom_call.1} parent=1 // loop_pre_header
      _
    $region3: #{tpu_custom_call.1} parent=1 // loop_header
      %s21 = sphi 0, %s25
      %p22 = scmp.ge.s32.totalorder %s21, 4
      %s31 = sphi 0, %s33
      %s34 = sphi 0, %s31
      %s35 = sphi 0, %s34
      %s51 = sphi 0, %s35
      %s55 = sphi 0, %s55
      %s57 = sphi 0, %s55
      %s58 = sphi 0, %s57
      %s72 = sphi 0, %s58
      %s76 = sphi 0, %s76
      %s78 = sphi 0, %s76
      %s79 = sphi 0, %s78
      %s93 = sphi 0, %s79
      %s97 = sphi 0, %s97
      %s99 = sphi 0, %s97
      %s100 = sphi 0, %s99
      %s114 = sphi 0, %s100
      %s118 = sphi 0, %s118
      %s120 = sphi 0, %s118
      %s121 = sphi 0, %s120
      %s135 = sphi 0, %s121
      %s139 = sphi 0, %s139
      %s141 = sphi 0, %s139
      %s142 = sphi 0, %s141
      %s156 = sphi 0, %s142
      %s160 = sphi 0, %s160
      %s162 = sphi 0, %s160
      %s163 = sphi 0, %s162
      %s177 = sphi 0, %s163
      %s181 = sphi 0, %s181
      %s183 = sphi 0, %s181
      %s184 = sphi 0, %s183
      %s198 = sphi 0, %s184
      %s202 = sphi 0, %s202
      %s204 = sphi 0, %s202
      %s205 = sphi 0, %s204
      %s219 = sphi 0, %s205
      %s223 = sphi 0, %s223
      %s225 = sphi 0, %s223
      %s226 = sphi 0, %s225
      %s240 = sphi 0, %s226
      %s244 = sphi 0, %s244
      %s246 = sphi 0, %s244
      %s247 = sphi 0, %s246
      %s261 = sphi 0, %s247
      %s265 = sphi 0, %s265
      %s267 = sphi 0, %s265
      %s268 = sphi 0, %s267
      %s282 = sphi 0, %s268
      %s288 = sphi 0, %s290
      %s291 = sphi 0, %s288
      %s292 = sphi 0, %s291
      %s308 = sphi 0, %s292
    $region4: #{tpu_custom_call.1} parent=1 // loop_header_branch
      %24 = sbr.rel (%p22) target = $region8
    $region5: #{tpu_custom_call.1} parent=1 // loop_body
      %s26 = ssub.s32 %s21, 1
      %s27 = ssub.s32 %s21, 2
      %s28 = sadd.s32 %s21, 1
      %s29 = ssub.s32 %s21, %s28
      %p30 = scmp.eq.s32.totalorder %s29, 0
      %s32 = sadd.s32 %s31, 1
      %s33 = scalar_select %p30, %s31, %s32
      %p36 = pneg %p30
      %p37 = scmp.eq.s32.totalorder %s21, 1
      %p38 = por %p36, %p37
      %p39 = scmp.ne.s32.totalorder %s31, %s34
      %p40 = scmp.eq.s32.totalorder %s21, 0
      %p41 = por %p39, %p40
      %p42 = scmp.ne.s32.totalorder %s31, %s34
      %p43 = scmp.eq.s32.totalorder %s26, 1
      %p44 = por %p42, %p43
      %p45 = scmp.ne.s32.totalorder %s34, %s35
      %p46 = scmp.eq.s32.totalorder %s26, 0
      %p47 = por %p45, %p46
      %p48 = scmp.ne.s32.totalorder %s34, %s35
      %p49 = scmp.eq.s32.totalorder %s27, 1
      %p50 = por %p48, %p49
      %p52 = scmp.ne.s32.totalorder %s35, %s51
      %p53 = scmp.eq.s32.totalorder %s27, 0
      %p54 = por %p52, %p53
      %s56 = sadd.s32 %s55, 1
      %p59 = scmp.eq.s32.totalorder %s21, 1
      %p60 = scmp.ne.s32.totalorder %s55, %s57
      %p61 = scmp.eq.s32.totalorder %s21, 0
      %p62 = por %p60, %p61
      %p63 = scmp.ne.s32.totalorder %s55, %s57
      %p64 = scmp.eq.s32.totalorder %s26, 1
      %p65 = por %p63, %p64
      %p66 = scmp.ne.s32.totalorder %s57, %s58
      %p67 = scmp.eq.s32.totalorder %s26, 0
      %p68 = por %p66, %p67
      %p69 = scmp.ne.s32.totalorder %s57, %s58
      %p70 = scmp.eq.s32.totalorder %s27, 1
      %p71 = por %p69, %p70
      %p73 = scmp.ne.s32.totalorder %s58, %s72
      %p74 = scmp.eq.s32.totalorder %s27, 0
      %p75 = por %p73, %p74
      %s77 = sadd.s32 %s76, 1
      %p80 = scmp.eq.s32.totalorder %s21, 1
      %p81 = scmp.ne.s32.totalorder %s76, %s78
      %p82 = scmp.eq.s32.totalorder %s21, 0
      %p83 = por %p81, %p82
      %p84 = scmp.ne.s32.totalorder %s76, %s78
      %p85 = scmp.eq.s32.totalorder %s26, 1
      %p86 = por %p84, %p85
      %p87 = scmp.ne.s32.totalorder %s78, %s79
      %p88 = scmp.eq.s32.totalorder %s26, 0
      %p89 = por %p87, %p88
      %p90 = scmp.ne.s32.totalorder %s78, %s79
      %p91 = scmp.eq.s32.totalorder %s27, 1
      %p92 = por %p90, %p91
      %p94 = scmp.ne.s32.totalorder %s79, %s93
      %p95 = scmp.eq.s32.totalorder %s27, 0
      %p96 = por %p94, %p95
      %s98 = sadd.s32 %s97, 1
      %p101 = scmp.eq.s32.totalorder %s21, 1
      %p102 = scmp.ne.s32.totalorder %s97, %s99
      %p103 = scmp.eq.s32.totalorder %s21, 0
      %p104 = por %p102, %p103
      %p105 = scmp.ne.s32.totalorder %s97, %s99
      %p106 = scmp.eq.s32.totalorder %s26, 1
      %p107 = por %p105, %p106
      %p108 = scmp.ne.s32.totalorder %s99, %s100
      %p109 = scmp.eq.s32.totalorder %s26, 0
      %p110 = por %p108, %p109
      %p111 = scmp.ne.s32.totalorder %s99, %s100
      %p112 = scmp.eq.s32.totalorder %s27, 1
      %p113 = por %p111, %p112
      %p115 = scmp.ne.s32.totalorder %s100, %s114
      %p116 = scmp.eq.s32.totalorder %s27, 0
      %p117 = por %p115, %p116
      %s119 = sadd.s32 %s118, 1
      %p122 = scmp.eq.s32.totalorder %s21, 1
      %p123 = scmp.ne.s32.totalorder %s118, %s120
      %p124 = scmp.eq.s32.totalorder %s21, 0
      %p125 = por %p123, %p124
      %p126 = scmp.ne.s32.totalorder %s118, %s120
      %p127 = scmp.eq.s32.totalorder %s26, 1
      %p128 = por %p126, %p127
      %p129 = scmp.ne.s32.totalorder %s120, %s121
      %p130 = scmp.eq.s32.totalorder %s26, 0
      %p131 = por %p129, %p130
      %p132 = scmp.ne.s32.totalorder %s120, %s121
      %p133 = scmp.eq.s32.totalorder %s27, 1
      %p134 = por %p132, %p133
      %p136 = scmp.ne.s32.totalorder %s121, %s135
      %p137 = scmp.eq.s32.totalorder %s27, 0
      %p138 = por %p136, %p137
      %s140 = sadd.s32 %s139, 1
      %p143 = scmp.eq.s32.totalorder %s21, 1
      %p144 = scmp.ne.s32.totalorder %s139, %s141
      %p145 = scmp.eq.s32.totalorder %s21, 0
      %p146 = por %p144, %p145
      %p147 = scmp.ne.s32.totalorder %s139, %s141
      %p148 = scmp.eq.s32.totalorder %s26, 1
      %p149 = por %p147, %p148
      %p150 = scmp.ne.s32.totalorder %s141, %s142
      %p151 = scmp.eq.s32.totalorder %s26, 0
      %p152 = por %p150, %p151
      %p153 = scmp.ne.s32.totalorder %s141, %s142
      %p154 = scmp.eq.s32.totalorder %s27, 1
      %p155 = por %p153, %p154
      %p157 = scmp.ne.s32.totalorder %s142, %s156
      %p158 = scmp.eq.s32.totalorder %s27, 0
      %p159 = por %p157, %p158
      %s161 = sadd.s32 %s160, 1
      %p164 = scmp.eq.s32.totalorder %s21, 1
      %p165 = scmp.ne.s32.totalorder %s160, %s162
      %p166 = scmp.eq.s32.totalorder %s21, 0
      %p167 = por %p165, %p166
      %p168 = scmp.ne.s32.totalorder %s160, %s162
      %p169 = scmp.eq.s32.totalorder %s26, 1
      %p170 = por %p168, %p169
      %p171 = scmp.ne.s32.totalorder %s162, %s163
      %p172 = scmp.eq.s32.totalorder %s26, 0
      %p173 = por %p171, %p172
      %p174 = scmp.ne.s32.totalorder %s162, %s163
      %p175 = scmp.eq.s32.totalorder %s27, 1
      %p176 = por %p174, %p175
      %p178 = scmp.ne.s32.totalorder %s163, %s177
      %p179 = scmp.eq.s32.totalorder %s27, 0
      %p180 = por %p178, %p179
      %s182 = sadd.s32 %s181, 1
      %p185 = scmp.eq.s32.totalorder %s21, 1
      %p186 = scmp.ne.s32.totalorder %s181, %s183
      %p187 = scmp.eq.s32.totalorder %s21, 0
      %p188 = por %p186, %p187
      %p189 = scmp.ne.s32.totalorder %s181, %s183
      %p190 = scmp.eq.s32.totalorder %s26, 1
      %p191 = por %p189, %p190
      %p192 = scmp.ne.s32.totalorder %s183, %s184
      %p193 = scmp.eq.s32.totalorder %s26, 0
      %p194 = por %p192, %p193
      %p195 = scmp.ne.s32.totalorder %s183, %s184
      %p196 = scmp.eq.s32.totalorder %s27, 1
      %p197 = por %p195, %p196
      %p199 = scmp.ne.s32.totalorder %s184, %s198
      %p200 = scmp.eq.s32.totalorder %s27, 0
      %p201 = por %p199, %p200
      %s203 = sadd.s32 %s202, 1
      %p206 = scmp.eq.s32.totalorder %s21, 1
      %p207 = scmp.ne.s32.totalorder %s202, %s204
      %p208 = scmp.eq.s32.totalorder %s21, 0
      %p209 = por %p207, %p208
      %p210 = scmp.ne.s32.totalorder %s202, %s204
      %p211 = scmp.eq.s32.totalorder %s26, 1
      %p212 = por %p210, %p211
      %p213 = scmp.ne.s32.totalorder %s204, %s205
      %p214 = scmp.eq.s32.totalorder %s26, 0
      %p215 = por %p213, %p214
      %p216 = scmp.ne.s32.totalorder %s204, %s205
      %p217 = scmp.eq.s32.totalorder %s27, 1
      %p218 = por %p216, %p217
      %p220 = scmp.ne.s32.totalorder %s205, %s219
      %p221 = scmp.eq.s32.totalorder %s27, 0
      %p222 = por %p220, %p221
      %s224 = sadd.s32 %s223, 1
      %p227 = scmp.eq.s32.totalorder %s21, 1
      %p228 = scmp.ne.s32.totalorder %s223, %s225
      %p229 = scmp.eq.s32.totalorder %s21, 0
      %p230 = por %p228, %p229
      %p231 = scmp.ne.s32.totalorder %s223, %s225
      %p232 = scmp.eq.s32.totalorder %s26, 1
      %p233 = por %p231, %p232
      %p234 = scmp.ne.s32.totalorder %s225, %s226
      %p235 = scmp.eq.s32.totalorder %s26, 0
      %p236 = por %p234, %p235
      %p237 = scmp.ne.s32.totalorder %s225, %s226
      %p238 = scmp.eq.s32.totalorder %s27, 1
      %p239 = por %p237, %p238
      %p241 = scmp.ne.s32.totalorder %s226, %s240
      %p242 = scmp.eq.s32.totalorder %s27, 0
      %p243 = por %p241, %p242
      %s245 = sadd.s32 %s244, 1
      %p248 = scmp.eq.s32.totalorder %s21, 1
      %p249 = scmp.ne.s32.totalorder %s244, %s246
      %p250 = scmp.eq.s32.totalorder %s21, 0
      %p251 = por %p249, %p250
      %p252 = scmp.ne.s32.totalorder %s244, %s246
      %p253 = scmp.eq.s32.totalorder %s26, 1
      %p254 = por %p252, %p253
      %p255 = scmp.ne.s32.totalorder %s246, %s247
      %p256 = scmp.eq.s32.totalorder %s26, 0
      %p257 = por %p255, %p256
      %p258 = scmp.ne.s32.totalorder %s246, %s247
      %p259 = scmp.eq.s32.totalorder %s27, 1
      %p260 = por %p258, %p259
      %p262 = scmp.ne.s32.totalorder %s247, %s261
      %p263 = scmp.eq.s32.totalorder %s27, 0
      %p264 = por %p262, %p263
      %s266 = sadd.s32 %s265, 1
      %p269 = scmp.eq.s32.totalorder %s21, 1
      %p270 = scmp.ne.s32.totalorder %s265, %s267
      %p271 = scmp.eq.s32.totalorder %s21, 0
      %p272 = por %p270, %p271
      %p273 = scmp.ne.s32.totalorder %s265, %s267
      %p274 = scmp.eq.s32.totalorder %s26, 1
      %p275 = por %p273, %p274
      %p276 = scmp.ne.s32.totalorder %s267, %s268
      %p277 = scmp.eq.s32.totalorder %s26, 0
      %p278 = por %p276, %p277
      %p279 = scmp.ne.s32.totalorder %s267, %s268
      %p280 = scmp.eq.s32.totalorder %s27, 1
      %p281 = por %p279, %p280
      %p283 = scmp.ne.s32.totalorder %s268, %s282
      %p284 = scmp.eq.s32.totalorder %s27, 0
      %p285 = por %p283, %p284
      %s286 = ssub.s32 %s21, %s28
      %p287 = scmp.eq.s32.totalorder %s286, 0
      %s289 = sadd.s32 %s288, 1
      %s290 = scalar_select %p287, %s288, %s289
      %p293 = pneg %p287
      %p294 = scmp.eq.s32.totalorder %s21, 1
      %p295 = por %p293, %p294
      %p296 = scmp.ne.s32.totalorder %s288, %s291
      %p297 = scmp.eq.s32.totalorder %s21, 0
      %p298 = por %p296, %p297
      %p299 = scmp.ne.s32.totalorder %s288, %s291
      %p300 = scmp.eq.s32.totalorder %s26, 1
      %p301 = por %p299, %p300
      %p302 = scmp.ne.s32.totalorder %s291, %s292
      %p303 = scmp.eq.s32.totalorder %s26, 0
      %p304 = por %p302, %p303
      %p305 = scmp.ne.s32.totalorder %s291, %s292
      %p306 = scmp.eq.s32.totalorder %s27, 1
      %p307 = por %p305, %p306
      %p309 = scmp.ne.s32.totalorder %s292, %s308
      %p310 = scmp.eq.s32.totalorder %s27, 0
      %p311 = por %p309, %p310
      %p312 = scmp.le.s32.totalorder 1, %s21
      %p313 = scmp.lt.s32.totalorder %s21, 3
      %p314 = pnand %p312, %p313
      %p315 = pneg %p314
      // Predicated region
      $region9: #{tpu_custom_call.1} parent=5 // pred_check
        _
      $region10: #{tpu_custom_call.1} parent=5 // pred_check_branch
        %317 = sbr.rel (%p314) target = $region12
      $region11: #{tpu_custom_call.1} parent=5 // pred_region
        %s318 = ssub.s32 %s21, 1
        // Predicated region
        $region13: #{tpu_custom_call.1} parent=11 // pred_check
          %p319 = pneg %p68
        $region14: #{tpu_custom_call.1} parent=11 // pred_check_branch
          %321 = sbr.rel (%p319) target = $region16
        $region15: #{tpu_custom_call.1} parent=11 // pred_region
          _
        $region16: #{tpu_custom_call.1} parent=11 // pred_fallthru
          _
        // Predicated region
        $region17: #{tpu_custom_call.1} parent=11 // pred_check
          %p322 = pneg %p89
        $region18: #{tpu_custom_call.1} parent=11 // pred_check_branch
          %324 = sbr.rel (%p322) target = $region20
        $region19: #{tpu_custom_call.1} parent=11 // pred_region
          _
        $region20: #{tpu_custom_call.1} parent=11 // pred_fallthru
          _
        // Predicated region
        $region21: #{tpu_custom_call.1} parent=11 // pred_check
          %p325 = pneg %p110
        $region22: #{tpu_custom_call.1} parent=11 // pred_check_branch
          %327 = sbr.rel (%p325) target = $region24
        $region23: #{tpu_custom_call.1} parent=11 // pred_region
          _
        $region24: #{tpu_custom_call.1} parent=11 // pred_fallthru
          _
        // Predicated region
        $region25: #{tpu_custom_call.1} parent=11 // pred_check
          %p328 = pneg %p131
        $region26: #{tpu_custom_call.1} parent=11 // pred_check_branch
          %330 = sbr.rel (%p328) target = $region28
        $region27: #{tpu_custom_call.1} parent=11 // pred_region
          _
        $region28: #{tpu_custom_call.1} parent=11 // pred_fallthru
          _
        // Predicated region
        $region29: #{tpu_custom_call.1} parent=11 // pred_check
          %p331 = pneg %p152
        $region30: #{tpu_custom_call.1} parent=11 // pred_check_branch
          %333 = sbr.rel (%p331) target = $region32
        $region31: #{tpu_custom_call.1} parent=11 // pred_region
          _
        $region32: #{tpu_custom_call.1} parent=11 // pred_fallthru
          _
        // Predicated region
        $region33: #{tpu_custom_call.1} parent=11 // pred_check
          %p334 = pneg %p173
        $region34: #{tpu_custom_call.1} parent=11 // pred_check_branch
          %336 = sbr.rel (%p334) target = $region36
        $region35: #{tpu_custom_call.1} parent=11 // pred_region
          _
        $region36: #{tpu_custom_call.1} parent=11 // pred_fallthru
          _
        // Predicated region
        $region37: #{tpu_custom_call.1} parent=11 // pred_check
          %p337 = pneg %p194
        $region38: #{tpu_custom_call.1} parent=11 // pred_check_branch
          %339 = sbr.rel (%p337) target = $region40
        $region39: #{tpu_custom_call.1} parent=11 // pred_region
          _
        $region40: #{tpu_custom_call.1} parent=11 // pred_fallthru
          _
        // Predicated region
        $region41: #{tpu_custom_call.1} parent=11 // pred_check
          %p340 = pneg %p215
        $region42: #{tpu_custom_call.1} parent=11 // pred_check_branch
          %342 = sbr.rel (%p340) target = $region44
        $region43: #{tpu_custom_call.1} parent=11 // pred_region
          _
        $region44: #{tpu_custom_call.1} parent=11 // pred_fallthru
          _
        // Predicated region
        $region45: #{tpu_custom_call.1} parent=11 // pred_check
          %p343 = pneg %p236
        $region46: #{tpu_custom_call.1} parent=11 // pred_check_branch
          %345 = sbr.rel (%p343) target = $region48
        $region47: #{tpu_custom_call.1} parent=11 // pred_region
          _
        $region48: #{tpu_custom_call.1} parent=11 // pred_fallthru
          _
        // Predicated region
        $region49: #{tpu_custom_call.1} parent=11 // pred_check
          %p346 = pneg %p257
        $region50: #{tpu_custom_call.1} parent=11 // pred_check_branch
          %348 = sbr.rel (%p346) target = $region52
        $region51: #{tpu_custom_call.1} parent=11 // pred_region
          _
        $region52: #{tpu_custom_call.1} parent=11 // pred_fallthru
          _
        // Predicated region
        $region53: #{tpu_custom_call.1} parent=11 // pred_check
          %p349 = pneg %p278
        $region54: #{tpu_custom_call.1} parent=11 // pred_check_branch
          %351 = sbr.rel (%p349) target = $region56
        $region55: #{tpu_custom_call.1} parent=11 // pred_region
          _
        $region56: #{tpu_custom_call.1} parent=11 // pred_fallthru
          _
      $region12: #{tpu_custom_call.1} parent=5 // pred_fallthru
        _
      %p352 = scmp.lt.s32.totalorder %s21, 2
      // Predicated region
      $region57: #{tpu_custom_call.1} parent=5 // pred_check
        %p353 = pneg %p352
      $region58: #{tpu_custom_call.1} parent=5 // pred_check_branch
        %355 = sbr.rel (%p353) target = $region60
      $region59: #{tpu_custom_call.1} parent=5 // pred_region
        // Predicated region
        $region61: #{tpu_custom_call.1} parent=59 // pred_check
          %p356 = pneg %p41
        $region62: #{tpu_custom_call.1} parent=59 // pred_check_branch
          %358 = sbr.rel (%p356) target = $region64
        $region63: #{tpu_custom_call.1} parent=59 // pred_region
          %p359 = scmp.lt.s32.totalorder %s21, 1
          %s360 = scalar_select %p359, %s21, 1
          %s361 = smul.addr %s360, 8
          %s362 = scalar_lea.vmem %s0, %s361
        $region64: #{tpu_custom_call.1} parent=59 // pred_fallthru
          _
      $region60: #{tpu_custom_call.1} parent=5 // pred_fallthru
        _
      %p363 = scmp.le.s32.totalorder 1, %s21
      %p364 = scmp.lt.s32.totalorder %s21, 3
      %p365 = pnand %p363, %p364
      %p366 = pneg %p365
      // Predicated region
      $region65: #{tpu_custom_call.1} parent=5 // pred_check
        _
      $region66: #{tpu_custom_call.1} parent=5 // pred_check_branch
        %368 = sbr.rel (%p365) target = $region68
      $region67: #{tpu_custom_call.1} parent=5 // pred_region
        %s369 = ssub.s32 %s21, 1
        %p370 = scmp.lt.s32.totalorder %s26, 1
        %s371 = scalar_select %p370, %s26, 1
        %s372 = smul.addr %s371, 8
        %s373 = scalar_lea.vmem %s0, %s372
        %p374 = pneg %p47
        %p375 = pneg %p44
        %p376 = pneg %p68
        %p377 = pneg %p65
        %p378 = pneg %p89
        %p379 = pneg %p86
        %p380 = pneg %p110
        %p381 = pneg %p107
        %p382 = pneg %p131
        %p383 = pneg %p128
        %p384 = pneg %p152
        %p385 = pneg %p149
        %p386 = pneg %p173
        %p387 = pneg %p170
        %p388 = pneg %p194
        %p389 = pneg %p191
        %p390 = pneg %p215
        %p391 = pneg %p212
        %p392 = pneg %p236
        %p393 = pneg %p233
        %p394 = pneg %p257
        %p395 = pneg %p254
        %p396 = pneg %p278
        %p397 = pneg %p275
        %p398 = pneg %p304
        %p399 = pneg %p301
        %s400 = sand.u32 %s291, 1
        %s401 = scalar_lea.sflag [#allocation3], %s400
        %s402 = sand.u32 %s291, 1
        %s403 = smul.addr %s402, 8
        %s404 = scalar_lea.vmem [#allocation2], %s403
        %p405 = scmp.lt.s32.totalorder %s26, 1
        %s406 = scalar_select %p405, %s26, 1
        %s407 = smul.addr %s406, 8
        %s408 = scalar_lea.vmem %s0, %s407
        %v410 = vld [vmem:[%s408] sm:$0xff]
        %v411 = vlaneseq
        %v412 = vshrl.u32 %v411, 7
        %v413 = vlaneseq
        %v414 = vand.u32 %v413, 127
        %vm415 = vcmp.le.s32.totalorder %v414, %v412
        %v416 = vld [vmem:[%s1] sm:$0x1]
        %v417 = vld [vmem:[%s2] sm:$0x1]
        %vm418 = vcmask 261120
        %v419 = vsel %vm418, %v410, 0.0
        %420 = vadd.xlane.f32.xlu0 %v419
        %v421 = vpop.xlane.xlu0 %420
        %v422 = vrcp.pop 32.0
        %v423 = vmul.f32 %v421, %v422
        %v424 = vsub.f32 %v410, %v423
        %v425 = vmul.f32 %v424, %v424
        %v426 = vsel %vm418, %v425, 0.0
        %427 = vadd.xlane.f32.xlu0 %v426
        %v428 = vpop.xlane.xlu0 %427
        %v429 = vmul.f32 %v428, %v422
        %v430 = vadd.f32 %v429, 1e-05
        %v431 = vrsqrt.pop %v430
        %v432 = vmul.f32 %v424, %v431
        %v434 = vlaneseq
        %v435 = vshrl.u32 %v434, 7
        %v436 = vsub.s32 0, %v435
        %v437 = vrot.slane %v416, %v436
        %v439 = vmul.f32 %v432, %v437
        %v441 = vlaneseq
        %v442 = vshrl.u32 %v441, 7
        %v443 = vsub.s32 0, %v442
        %v444 = vrot.slane %v417, %v443
        %v446 = vadd.f32 %v439, %v444
        %v447 = vpack.c.bf16 %v446, %v446
        %v448 = vld [vmem:[%s3] sm:$0xf]
        %v449 = vld [vmem:[%s3 + $0x4] sm:$0xf]
        %v450 = vld [vmem:[%s3 + $0x8] sm:$0xf]
        %v451 = vld [vmem:[%s3 + $0xc] sm:$0xf]
        %v456 = vunpack.c.l.b16 %v448
        %v457 = vunpack.c.l.b16 %v449
        %v458 = vunpack.c.l.b16 %v450
        %v459 = vunpack.c.l.b16 %v451
        %v460 = vpack.c.b16 %v457, %v456
        %v461 = vpack.c.b16 %v459, %v458
        %v465 = vsel %vm418, %v447, 0
        %467 = vmatprep.subr.bf16.mxu0 0
        %468 = vmatpush1.bf16.msra.mxu0 0
        %469 = vmatprep.subr.bf16.mxu0 0
        %470 = vmatpush1.bf16.msra.mxu0 0
        %471 = vmatprep.subr.bf16.mxu0 0
        %472 = vmatpush1.bf16.msra.mxu0 0
        %473 = vmatprep.subr.bf16.mxu0 0
        %474 = vmatpush1.bf16.msra.mxu0 0
        %475 = vmatprep.subr.bf16.mxu0 0
        %476 = vmatpush1.bf16.msra.mxu0 0
        %477 = vmatprep.subr.bf16.mxu0 0
        %478 = vmatpush1.bf16.msra.mxu0 0
        %479 = vmatprep.subr.bf16.mxu0 0
        %480 = vmatpush1.bf16.msra.mxu0 %v461
        %481 = vmatprep.subr.bf16.mxu0 0
        %482 = vmatpush1.bf16.msra.mxu0 %v460
        %483 = vmatprep.subr.bf16.mxu0 0
        %484 = vmatpush2.bf16.msra.mxu0 0
        %485 = vmatprep.subr.bf16.mxu0 0
        %486 = vmatpush2.bf16.msra.mxu0 0
        %487 = vmatprep.subr.bf16.mxu0 0
        %488 = vmatpush2.bf16.msra.mxu0 0
        %489 = vmatprep.subr.bf16.mxu0 0
        %490 = vmatpush2.bf16.msra.mxu0 0
        %491 = vmatprep.subr.bf16.mxu0 0
        %492 = vmatpush2.bf16.msra.mxu0 0
        %493 = vmatprep.subr.bf16.mxu0 0
        %494 = vmatpush2.bf16.msra.mxu0 0
        %495 = vmatprep.subr.bf16.mxu0 0
        %496 = vmatpush2.bf16.msra.mxu0 0
        %497 = vmatprep.subr.bf16.mxu0 0
        %498 = vmatpush2.bf16.msra.mxu0 0
        %499 = vmatprep.mubr.bf16.mxu0 0
        %500 = vmatmul.mubr.bf16.gmra.mxu0 %v465
        %v501 = vpop.f32.mrf.mxu0
        %v502 = vadd.f32 0.0, %v501
        %v503 = vpop.f32.mrf.mxu0
        %v504 = vpop.f32.mrf.mxu0
        %v505 = vpop.f32.mrf.mxu0
        %506 = vdwg.mxu0
        %v507 = vld [vmem:[%s4] sm:$0xf]
        %v508 = vld [vmem:[%s4 + $0x4] sm:$0xf]
        %v509 = vld [vmem:[%s4 + $0x8] sm:$0xf]
        %v510 = vld [vmem:[%s4 + $0xc] sm:$0xf]
        %v511 = vmul.f32 %v502, 0.35355338
        %v512 = vpack.c.bf16 %v511, %v511
        %v513 = vpack.c.bf16 %v502, %v502
        %515 = vrot.lane.b32.xlu0 %v513, 96
        %v516 = vpop.permute.xlu0 %515
        %vm517 = vcmask 64512
        %v519 = vsel %vm517, %v512, 0
        %v522 = vsel %vm517, %v516, 0
        %524 = vmatprep.subr.bf16.mxu0 0
        %525 = vmatpush1.bf16.xpose.msra.mxu0 0
        %526 = vmatprep.subr.bf16.mxu0 0
        %527 = vmatpush1.bf16.xpose.msra.mxu0 0
        %528 = vmatprep.subr.bf16.mxu0 0
        %529 = vmatpush1.bf16.xpose.msra.mxu0 0
        %530 = vmatprep.subr.bf16.mxu0 0
        %531 = vmatpush1.bf16.xpose.msra.mxu0 0
        %532 = vmatprep.subr.bf16.mxu0 0
        %533 = vmatpush1.bf16.xpose.msra.mxu0 0
        %534 = vmatprep.subr.bf16.mxu0 0
        %535 = vmatpush1.bf16.xpose.msra.mxu0 0
        %536 = vmatprep.subr.bf16.mxu0 0
        %537 = vmatpush1.bf16.xpose.msra.mxu0 0
        %538 = vmatprep.subr.bf16.mxu0 0
        %539 = vmatpush1.bf16.xpose.msra.mxu0 %v522
        %540 = vmatprep.subr.bf16.mxu0 0
        %541 = vmatpush2.bf16.xpose.msra.mxu0 0
        %542 = vmatprep.subr.bf16.mxu0 0
        %543 = vmatpush2.bf16.xpose.msra.mxu0 0
        %544 = vmatprep.subr.bf16.mxu0 0
        %545 = vmatpush2.bf16.xpose.msra.mxu0 0
        %546 = vmatprep.subr.bf16.mxu0 0
        %547 = vmatpush2.bf16.xpose.msra.mxu0 0
        %548 = vmatprep.subr.bf16.mxu0 0
        %549 = vmatpush2.bf16.xpose.msra.mxu0 0
        %550 = vmatprep.subr.bf16.mxu0 0
        %551 = vmatpush2.bf16.xpose.msra.mxu0 0
        %552 = vmatprep.subr.bf16.mxu0 0
        %553 = vmatpush2.bf16.xpose.msra.mxu0 0
        %554 = vmatprep.subr.bf16.mxu0 0
        %555 = vmatpush2.bf16.xpose.msra.mxu0 0
        %556 = vmatprep.mubr.bf16.mxu0 0
        %557 = vmatmul.mubr.bf16.gmra.mxu0 %v519
        %v558 = vpop.f32.mrf.mxu0
        %v559 = vadd.f32 0.0, %v558
        %v560 = vpop.f32.mrf.mxu0
        %v561 = vpop.f32.mrf.mxu0
        %v562 = vpop.f32.mrf.mxu0
        %563 = vdwg.mxu0
        %v564 = vsel %vm415, %v559, -1e+30
        %v565 = vsel %vm517, %v564, -inf
        %566 = vmax.xlane.f32.xlu0 %v565
        %v567 = vpop.xlane.xlu0 %566
        %v568 = vsub.f32 %v564, %v567
        %v569 = vmul.f32 %v568, 1.442695
        %v570 = vpow.pop %v569
        %v571 = vsel %vm517, %v570, 0.0
        %572 = vadd.xlane.f32.xlu0 %v571
        %v573 = vpop.xlane.xlu0 %572
        %v574 = vrcp.pop %v573
        %v575 = vmul.f32 %v570, %v574
        %v576 = vpack.c.bf16 %v575, %v575
        %577 = vrot.lane.b32.xlu0 %v513, 64
        %v578 = vpop.permute.xlu0 %577
        %v580 = vsel %vm517, %v576, 0
        %vm582 = vcmask 1043456
        %v584 = vsel %vm582, %v578, 0
        %586 = vmatprep.subr.bf16.mxu0 0
        %587 = vmatpush1.bf16.msra.mxu0 0
        %588 = vmatprep.subr.bf16.mxu0 0
        %589 = vmatpush1.bf16.msra.mxu0 0
        %590 = vmatprep.subr.bf16.mxu0 0
        %591 = vmatpush1.bf16.msra.mxu0 0
        %592 = vmatprep.subr.bf16.mxu0 0
        %593 = vmatpush1.bf16.msra.mxu0 0
        %594 = vmatprep.subr.bf16.mxu0 0
        %595 = vmatpush1.bf16.msra.mxu0 0
        %596 = vmatprep.subr.bf16.mxu0 0
        %597 = vmatpush1.bf16.msra.mxu0 0
        %598 = vmatprep.subr.bf16.mxu0 0
        %599 = vmatpush1.bf16.msra.mxu0 0
        %600 = vmatprep.subr.bf16.mxu0 0
        %601 = vmatpush1.bf16.msra.mxu0 %v584
        %602 = vmatprep.subr.bf16.mxu0 0
        %603 = vmatpush2.bf16.msra.mxu0 0
        %604 = vmatprep.subr.bf16.mxu0 0
        %605 = vmatpush2.bf16.msra.mxu0 0
        %606 = vmatprep.subr.bf16.mxu0 0
        %607 = vmatpush2.bf16.msra.mxu0 0
        %608 = vmatprep.subr.bf16.mxu0 0
        %609 = vmatpush2.bf16.msra.mxu0 0
        %610 = vmatprep.subr.bf16.mxu0 0
        %611 = vmatpush2.bf16.msra.mxu0 0
        %612 = vmatprep.subr.bf16.mxu0 0
        %613 = vmatpush2.bf16.msra.mxu0 0
        %614 = vmatprep.subr.bf16.mxu0 0
        %615 = vmatpush2.bf16.msra.mxu0 0
        %616 = vmatprep.subr.bf16.mxu0 0
        %617 = vmatpush2.bf16.msra.mxu0 0
        %618 = vmatprep.mubr.bf16.mxu0 0
        %619 = vmatmul.mubr.bf16.gmra.mxu0 %v580
        %v620 = vpop.f32.mrf.mxu0
        %v621 = vadd.f32 0.0, %v620
        %v622 = vpop.f32.mrf.mxu0
        %v623 = vpop.f32.mrf.mxu0
        %v624 = vpop.f32.mrf.mxu0
        %625 = vdwg.mxu0
        %v626 = vpack.c.bf16 %v621, %v621
        %628 = vrot.lane.b32.xlu0 %v512, 120
        %v629 = vpop.permute.xlu0 %628
        %630 = vrot.lane.b32.xlu0 %v513, 88
        %v631 = vpop.permute.xlu0 %630
        %v633 = vsel %vm517, %v629, 0
        %v636 = vsel %vm517, %v631, 0
        %638 = vmatprep.subr.bf16.mxu0 0
        %639 = vmatpush1.bf16.xpose.msra.mxu0 0
        %640 = vmatprep.subr.bf16.mxu0 0
        %641 = vmatpush1.bf16.xpose.msra.mxu0 0
        %642 = vmatprep.subr.bf16.mxu0 0
        %643 = vmatpush1.bf16.xpose.msra.mxu0 0
        %644 = vmatprep.subr.bf16.mxu0 0
        %645 = vmatpush1.bf16.xpose.msra.mxu0 0
        %646 = vmatprep.subr.bf16.mxu0 0
        %647 = vmatpush1.bf16.xpose.msra.mxu0 0
        %648 = vmatprep.subr.bf16.mxu0 0
        %649 = vmatpush1.bf16.xpose.msra.mxu0 0
        %650 = vmatprep.subr.bf16.mxu0 0
        %651 = vmatpush1.bf16.xpose.msra.mxu0 0
        %652 = vmatprep.subr.bf16.mxu0 0
        %653 = vmatpush1.bf16.xpose.msra.mxu0 %v636
        %654 = vmatprep.subr.bf16.mxu0 0
        %655 = vmatpush2.bf16.xpose.msra.mxu0 0
        %656 = vmatprep.subr.bf16.mxu0 0
        %657 = vmatpush2.bf16.xpose.msra.mxu0 0
        %658 = vmatprep.subr.bf16.mxu0 0
        %659 = vmatpush2.bf16.xpose.msra.mxu0 0
        %660 = vmatprep.subr.bf16.mxu0 0
        %661 = vmatpush2.bf16.xpose.msra.mxu0 0
        %662 = vmatprep.subr.bf16.mxu0 0
        %663 = vmatpush2.bf16.xpose.msra.mxu0 0
        %664 = vmatprep.subr.bf16.mxu0 0
        %665 = vmatpush2.bf16.xpose.msra.mxu0 0
        %666 = vmatprep.subr.bf16.mxu0 0
        %667 = vmatpush2.bf16.xpose.msra.mxu0 0
        %668 = vmatprep.subr.bf16.mxu0 0
        %669 = vmatpush2.bf16.xpose.msra.mxu0 0
        %670 = vmatprep.mubr.bf16.mxu0 0
        %671 = vmatmul.mubr.bf16.gmra.mxu0 %v633
        %v672 = vpop.f32.mrf.mxu0
        %v673 = vadd.f32 0.0, %v672
        %v674 = vpop.f32.mrf.mxu0
        %v675 = vpop.f32.mrf.mxu0
        %v676 = vpop.f32.mrf.mxu0
        %677 = vdwg.mxu0
        %v678 = vsel %vm415, %v673, -1e+30
        %v679 = vsel %vm517, %v678, -inf
        %680 = vmax.xlane.f32.xlu0 %v679
        %v681 = vpop.xlane.xlu0 %680
        %v682 = vsub.f32 %v678, %v681
        %v683 = vmul.f32 %v682, 1.442695
        %v684 = vpow.pop %v683
        %v685 = vsel %vm517, %v684, 0.0
        %686 = vadd.xlane.f32.xlu0 %v685
        %v687 = vpop.xlane.xlu0 %686
        %v688 = vrcp.pop %v687
        %v689 = vmul.f32 %v684, %v688
        %v690 = vpack.c.bf16 %v689, %v689
        %691 = vrot.lane.b32.xlu0 %v513, 56
        %v692 = vpop.permute.xlu0 %691
        %v694 = vsel %vm517, %v690, 0
        %v697 = vsel %vm582, %v692, 0
        %699 = vmatprep.subr.bf16.mxu0 0
        %700 = vmatpush1.bf16.msra.mxu0 0
        %701 = vmatprep.subr.bf16.mxu0 0
        %702 = vmatpush1.bf16.msra.mxu0 0
        %703 = vmatprep.subr.bf16.mxu0 0
        %704 = vmatpush1.bf16.msra.mxu0 0
        %705 = vmatprep.subr.bf16.mxu0 0
        %706 = vmatpush1.bf16.msra.mxu0 0
        %707 = vmatprep.subr.bf16.mxu0 0
        %708 = vmatpush1.bf16.msra.mxu0 0
        %709 = vmatprep.subr.bf16.mxu0 0
        %710 = vmatpush1.bf16.msra.mxu0 0
        %711 = vmatprep.subr.bf16.mxu0 0
        %712 = vmatpush1.bf16.msra.mxu0 0
        %713 = vmatprep.subr.bf16.mxu0 0
        %714 = vmatpush1.bf16.msra.mxu0 %v697
        %715 = vmatprep.subr.bf16.mxu0 0
        %716 = vmatpush2.bf16.msra.mxu0 0
        %717 = vmatprep.subr.bf16.mxu0 0
        %718 = vmatpush2.bf16.msra.mxu0 0
        %719 = vmatprep.subr.bf16.mxu0 0
        %720 = vmatpush2.bf16.msra.mxu0 0
        %721 = vmatprep.subr.bf16.mxu0 0
        %722 = vmatpush2.bf16.msra.mxu0 0
        %723 = vmatprep.subr.bf16.mxu0 0
        %724 = vmatpush2.bf16.msra.mxu0 0
        %725 = vmatprep.subr.bf16.mxu0 0
        %726 = vmatpush2.bf16.msra.mxu0 0
        %727 = vmatprep.subr.bf16.mxu0 0
        %728 = vmatpush2.bf16.msra.mxu0 0
        %729 = vmatprep.subr.bf16.mxu0 0
        %730 = vmatpush2.bf16.msra.mxu0 0
        %731 = vmatprep.mubr.bf16.mxu0 0
        %732 = vmatmul.mubr.bf16.gmra.mxu0 %v694
        %v733 = vpop.f32.mrf.mxu0
        %v734 = vadd.f32 0.0, %v733
        %v735 = vpop.f32.mrf.mxu0
        %v736 = vpop.f32.mrf.mxu0
        %v737 = vpop.f32.mrf.mxu0
        %738 = vdwg.mxu0
        %v739 = vpack.c.bf16 %v734, %v734
        %v741 = vsel %vm517, %v739, 0
        %v744 = vsel %vm582, %v508, 0
        %746 = vmatprep.subr.bf16.mxu0 0
        %747 = vmatpush1.bf16.msra.mxu0 0
        %748 = vmatprep.subr.bf16.mxu0 0
        %749 = vmatpush1.bf16.msra.mxu0 0
        %750 = vmatprep.subr.bf16.mxu0 0
        %751 = vmatpush1.bf16.msra.mxu0 0
        %752 = vmatprep.subr.bf16.mxu0 0
        %753 = vmatpush1.bf16.msra.mxu0 0
        %754 = vmatprep.subr.bf16.mxu0 0
        %755 = vmatpush1.bf16.msra.mxu0 0
        %756 = vmatprep.subr.bf16.mxu0 0
        %757 = vmatpush1.bf16.msra.mxu0 0
        %758 = vmatprep.subr.bf16.mxu0 0
        %759 = vmatpush1.bf16.msra.mxu0 0
        %760 = vmatprep.subr.bf16.mxu0 0
        %761 = vmatpush1.bf16.msra.mxu0 %v744
        %762 = vmatprep.subr.bf16.mxu0 0
        %763 = vmatpush2.bf16.msra.mxu0 0
        %764 = vmatprep.subr.bf16.mxu0 0
        %765 = vmatpush2.bf16.msra.mxu0 0
        %766 = vmatprep.subr.bf16.mxu0 0
        %767 = vmatpush2.bf16.msra.mxu0 0
        %768 = vmatprep.subr.bf16.mxu0 0
        %769 = vmatpush2.bf16.msra.mxu0 0
        %770 = vmatprep.subr.bf16.mxu0 0
        %771 = vmatpush2.bf16.msra.mxu0 0
        %772 = vmatprep.subr.bf16.mxu0 0
        %773 = vmatpush2.bf16.msra.mxu0 0
        %774 = vmatprep.subr.bf16.mxu0 0
        %775 = vmatpush2.bf16.msra.mxu0 0
        %776 = vmatprep.subr.bf16.mxu0 0
        %777 = vmatpush2.bf16.msra.mxu0 0
        %778 = vmatprep.mubr.bf16.mxu0 0
        %779 = vmatmul.mubr.bf16.gmra.mxu0 %v741
        %v780 = vpop.f32.mrf.mxu0
        %v781 = vadd.f32 0.0, %v780
        %v782 = vpop.f32.mrf.mxu0
        %v783 = vpop.f32.mrf.mxu0
        %v784 = vpop.f32.mrf.mxu0
        %785 = vdwg.mxu0
        %v787 = vsel %vm517, %v626, 0
        %v790 = vsel %vm582, %v507, 0
        %792 = vmatprep.subr.bf16.mxu0 0
        %793 = vmatpush1.bf16.msra.mxu0 0
        %794 = vmatprep.subr.bf16.mxu0 0
        %795 = vmatpush1.bf16.msra.mxu0 0
        %796 = vmatprep.subr.bf16.mxu0 0
        %797 = vmatpush1.bf16.msra.mxu0 0
        %798 = vmatprep.subr.bf16.mxu0 0
        %799 = vmatpush1.bf16.msra.mxu0 0
        %800 = vmatprep.subr.bf16.mxu0 0
        %801 = vmatpush1.bf16.msra.mxu0 0
        %802 = vmatprep.subr.bf16.mxu0 0
        %803 = vmatpush1.bf16.msra.mxu0 0
        %804 = vmatprep.subr.bf16.mxu0 0
        %805 = vmatpush1.bf16.msra.mxu0 0
        %806 = vmatprep.subr.bf16.mxu0 0
        %807 = vmatpush1.bf16.msra.mxu0 %v790
        %808 = vmatprep.subr.bf16.mxu0 0
        %809 = vmatpush2.bf16.msra.mxu0 0
        %810 = vmatprep.subr.bf16.mxu0 0
        %811 = vmatpush2.bf16.msra.mxu0 0
        %812 = vmatprep.subr.bf16.mxu0 0
        %813 = vmatpush2.bf16.msra.mxu0 0
        %814 = vmatprep.subr.bf16.mxu0 0
        %815 = vmatpush2.bf16.msra.mxu0 0
        %816 = vmatprep.subr.bf16.mxu0 0
        %817 = vmatpush2.bf16.msra.mxu0 0
        %818 = vmatprep.subr.bf16.mxu0 0
        %819 = vmatpush2.bf16.msra.mxu0 0
        %820 = vmatprep.subr.bf16.mxu0 0
        %821 = vmatpush2.bf16.msra.mxu0 0
        %822 = vmatprep.subr.bf16.mxu0 0
        %823 = vmatpush2.bf16.msra.mxu0 0
        %824 = vmatprep.mubr.bf16.mxu0 0
        %825 = vmatmul.mubr.bf16.gmra.mxu0 %v787
        %v826 = vpop.f32.mrf.mxu0
        %v827 = vadd.f32 %v781, %v826
        %v828 = vpop.f32.mrf.mxu0
        %v829 = vpop.f32.mrf.mxu0
        %v830 = vpop.f32.mrf.mxu0
        %831 = vdwg.mxu0
        %832 = vrot.lane.b32.xlu0 %v512, 112
        %v833 = vpop.permute.xlu0 %832
        %834 = vrot.lane.b32.xlu0 %v513, 80
        %v835 = vpop.permute.xlu0 %834
        %v837 = vsel %vm517, %v833, 0
        %v840 = vsel %vm517, %v835, 0
        %842 = vmatprep.subr.bf16.mxu0 0
        %843 = vmatpush1.bf16.xpose.msra.mxu0 0
        %844 = vmatprep.subr.bf16.mxu0 0
        %845 = vmatpush1.bf16.xpose.msra.mxu0 0
        %846 = vmatprep.subr.bf16.mxu0 0
        %847 = vmatpush1.bf16.xpose.msra.mxu0 0
        %848 = vmatprep.subr.bf16.mxu0 0
        %849 = vmatpush1.bf16.xpose.msra.mxu0 0
        %850 = vmatprep.subr.bf16.mxu0 0
        %851 = vmatpush1.bf16.xpose.msra.mxu0 0
        %852 = vmatprep.subr.bf16.mxu0 0
        %853 = vmatpush1.bf16.xpose.msra.mxu0 0
        %854 = vmatprep.subr.bf16.mxu0 0
        %855 = vmatpush1.bf16.xpose.msra.mxu0 0
        %856 = vmatprep.subr.bf16.mxu0 0
        %857 = vmatpush1.bf16.xpose.msra.mxu0 %v840
        %858 = vmatprep.subr.bf16.mxu0 0
        %859 = vmatpush2.bf16.xpose.msra.mxu0 0
        %860 = vmatprep.subr.bf16.mxu0 0
        %861 = vmatpush2.bf16.xpose.msra.mxu0 0
        %862 = vmatprep.subr.bf16.mxu0 0
        %863 = vmatpush2.bf16.xpose.msra.mxu0 0
        %864 = vmatprep.subr.bf16.mxu0 0
        %865 = vmatpush2.bf16.xpose.msra.mxu0 0
        %866 = vmatprep.subr.bf16.mxu0 0
        %867 = vmatpush2.bf16.xpose.msra.mxu0 0
        %868 = vmatprep.subr.bf16.mxu0 0
        %869 = vmatpush2.bf16.xpose.msra.mxu0 0
        %870 = vmatprep.subr.bf16.mxu0 0
        %871 = vmatpush2.bf16.xpose.msra.mxu0 0
        %872 = vmatprep.subr.bf16.mxu0 0
        %873 = vmatpush2.bf16.xpose.msra.mxu0 0
        %874 = vmatprep.mubr.bf16.mxu0 0
        %875 = vmatmul.mubr.bf16.gmra.mxu0 %v837
        %v876 = vpop.f32.mrf.mxu0
        %v877 = vadd.f32 0.0, %v876
        %v878 = vpop.f32.mrf.mxu0
        %v879 = vpop.f32.mrf.mxu0
        %v880 = vpop.f32.mrf.mxu0
        %881 = vdwg.mxu0
        %v882 = vsel %vm415, %v877, -1e+30
        %v883 = vsel %vm517, %v882, -inf
        %884 = vmax.xlane.f32.xlu0 %v883
        %v885 = vpop.xlane.xlu0 %884
        %v886 = vsub.f32 %v882, %v885
        %v887 = vmul.f32 %v886, 1.442695
        %v888 = vpow.pop %v887
        %v889 = vsel %vm517, %v888, 0.0
        %890 = vadd.xlane.f32.xlu0 %v889
        %v891 = vpop.xlane.xlu0 %890
        %v892 = vrcp.pop %v891
        %v893 = vmul.f32 %v888, %v892
        %v894 = vpack.c.bf16 %v893, %v893
        %895 = vrot.lane.b32.xlu0 %v513, 48
        %v896 = vpop.permute.xlu0 %895
        %v898 = vsel %vm517, %v894, 0
        %v901 = vsel %vm582, %v896, 0
        %903 = vmatprep.subr.bf16.mxu0 0
        %904 = vmatpush1.bf16.msra.mxu0 0
        %905 = vmatprep.subr.bf16.mxu0 0
        %906 = vmatpush1.bf16.msra.mxu0 0
        %907 = vmatprep.subr.bf16.mxu0 0
        %908 = vmatpush1.bf16.msra.mxu0 0
        %909 = vmatprep.subr.bf16.mxu0 0
        %910 = vmatpush1.bf16.msra.mxu0 0
        %911 = vmatprep.subr.bf16.mxu0 0
        %912 = vmatpush1.bf16.msra.mxu0 0
        %913 = vmatprep.subr.bf16.mxu0 0
        %914 = vmatpush1.bf16.msra.mxu0 0
        %915 = vmatprep.subr.bf16.mxu0 0
        %916 = vmatpush1.bf16.msra.mxu0 0
        %917 = vmatprep.subr.bf16.mxu0 0
        %918 = vmatpush1.bf16.msra.mxu0 %v901
        %919 = vmatprep.subr.bf16.mxu0 0
        %920 = vmatpush2.bf16.msra.mxu0 0
        %921 = vmatprep.subr.bf16.mxu0 0
        %922 = vmatpush2.bf16.msra.mxu0 0
        %923 = vmatprep.subr.bf16.mxu0 0
        %924 = vmatpush2.bf16.msra.mxu0 0
        %925 = vmatprep.subr.bf16.mxu0 0
        %926 = vmatpush2.bf16.msra.mxu0 0
        %927 = vmatprep.subr.bf16.mxu0 0
        %928 = vmatpush2.bf16.msra.mxu0 0
        %929 = vmatprep.subr.bf16.mxu0 0
        %930 = vmatpush2.bf16.msra.mxu0 0
        %931 = vmatprep.subr.bf16.mxu0 0
        %932 = vmatpush2.bf16.msra.mxu0 0
        %933 = vmatprep.subr.bf16.mxu0 0
        %934 = vmatpush2.bf16.msra.mxu0 0
        %935 = vmatprep.mubr.bf16.mxu0 0
        %936 = vmatmul.mubr.bf16.gmra.mxu0 %v898
        %v937 = vpop.f32.mrf.mxu0
        %v938 = vadd.f32 0.0, %v937
        %v939 = vpop.f32.mrf.mxu0
        %v940 = vpop.f32.mrf.mxu0
        %v941 = vpop.f32.mrf.mxu0
        %942 = vdwg.mxu0
        %v943 = vpack.c.bf16 %v938, %v938
        %v945 = vsel %vm517, %v943, 0
        %v948 = vsel %vm582, %v509, 0
        %950 = vmatprep.subr.bf16.mxu0 0
        %951 = vmatpush1.bf16.msra.mxu0 0
        %952 = vmatprep.subr.bf16.mxu0 0
        %953 = vmatpush1.bf16.msra.mxu0 0
        %954 = vmatprep.subr.bf16.mxu0 0
        %955 = vmatpush1.bf16.msra.mxu0 0
        %956 = vmatprep.subr.bf16.mxu0 0
        %957 = vmatpush1.bf16.msra.mxu0 0
        %958 = vmatprep.subr.bf16.mxu0 0
        %959 = vmatpush1.bf16.msra.mxu0 0
        %960 = vmatprep.subr.bf16.mxu0 0
        %961 = vmatpush1.bf16.msra.mxu0 0
        %962 = vmatprep.subr.bf16.mxu0 0
        %963 = vmatpush1.bf16.msra.mxu0 0
        %964 = vmatprep.subr.bf16.mxu0 0
        %965 = vmatpush1.bf16.msra.mxu0 %v948
        %966 = vmatprep.subr.bf16.mxu0 0
        %967 = vmatpush2.bf16.msra.mxu0 0
        %968 = vmatprep.subr.bf16.mxu0 0
        %969 = vmatpush2.bf16.msra.mxu0 0
        %970 = vmatprep.subr.bf16.mxu0 0
        %971 = vmatpush2.bf16.msra.mxu0 0
        %972 = vmatprep.subr.bf16.mxu0 0
        %973 = vmatpush2.bf16.msra.mxu0 0
        %974 = vmatprep.subr.bf16.mxu0 0
        %975 = vmatpush2.bf16.msra.mxu0 0
        %976 = vmatprep.subr.bf16.mxu0 0
        %977 = vmatpush2.bf16.msra.mxu0 0
        %978 = vmatprep.subr.bf16.mxu0 0
        %979 = vmatpush2.bf16.msra.mxu0 0
        %980 = vmatprep.subr.bf16.mxu0 0
        %981 = vmatpush2.bf16.msra.mxu0 0
        %982 = vmatprep.mubr.bf16.mxu0 0
        %983 = vmatmul.mubr.bf16.gmra.mxu0 %v945
        %v984 = vpop.f32.mrf.mxu0
        %v985 = vadd.f32 0.0, %v984
        %v986 = vpop.f32.mrf.mxu0
        %v987 = vpop.f32.mrf.mxu0
        %v988 = vpop.f32.mrf.mxu0
        %989 = vdwg.mxu0
        %v990 = vadd.f32 %v827, %v985
        %991 = vrot.lane.b32.xlu0 %v512, 104
        %v992 = vpop.permute.xlu0 %991
        %993 = vrot.lane.b32.xlu0 %v513, 72
        %v994 = vpop.permute.xlu0 %993
        %v996 = vsel %vm517, %v992, 0
        %v999 = vsel %vm517, %v994, 0
        %1001 = vmatprep.subr.bf16.mxu0 0
        %1002 = vmatpush1.bf16.xpose.msra.mxu0 0
        %1003 = vmatprep.subr.bf16.mxu0 0
        %1004 = vmatpush1.bf16.xpose.msra.mxu0 0
        %1005 = vmatprep.subr.bf16.mxu0 0
        %1006 = vmatpush1.bf16.xpose.msra.mxu0 0
        %1007 = vmatprep.subr.bf16.mxu0 0
        %1008 = vmatpush1.bf16.xpose.msra.mxu0 0
        %1009 = vmatprep.subr.bf16.mxu0 0
        %1010 = vmatpush1.bf16.xpose.msra.mxu0 0
        %1011 = vmatprep.subr.bf16.mxu0 0
        %1012 = vmatpush1.bf16.xpose.msra.mxu0 0
        %1013 = vmatprep.subr.bf16.mxu0 0
        %1014 = vmatpush1.bf16.xpose.msra.mxu0 0
        %1015 = vmatprep.subr.bf16.mxu0 0
        %1016 = vmatpush1.bf16.xpose.msra.mxu0 %v999
        %1017 = vmatprep.subr.bf16.mxu0 0
        %1018 = vmatpush2.bf16.xpose.msra.mxu0 0
        %1019 = vmatprep.subr.bf16.mxu0 0
        %1020 = vmatpush2.bf16.xpose.msra.mxu0 0
        %1021 = vmatprep.subr.bf16.mxu0 0
        %1022 = vmatpush2.bf16.xpose.msra.mxu0 0
        %1023 = vmatprep.subr.bf16.mxu0 0
        %1024 = vmatpush2.bf16.xpose.msra.mxu0 0
        %1025 = vmatprep.subr.bf16.mxu0 0
        %1026 = vmatpush2.bf16.xpose.msra.mxu0 0
        %1027 = vmatprep.subr.bf16.mxu0 0
        %1028 = vmatpush2.bf16.xpose.msra.mxu0 0
        %1029 = vmatprep.subr.bf16.mxu0 0
        %1030 = vmatpush2.bf16.xpose.msra.mxu0 0
        %1031 = vmatprep.subr.bf16.mxu0 0
        %1032 = vmatpush2.bf16.xpose.msra.mxu0 0
        %1033 = vmatprep.mubr.bf16.mxu0 0
        %1034 = vmatmul.mubr.bf16.gmra.mxu0 %v996
        %v1035 = vpop.f32.mrf.mxu0
        %v1036 = vadd.f32 0.0, %v1035
        %v1037 = vpop.f32.mrf.mxu0
        %v1038 = vpop.f32.mrf.mxu0
        %v1039 = vpop.f32.mrf.mxu0
        %1040 = vdwg.mxu0
        %v1041 = vsel %vm415, %v1036, -1e+30
        %v1042 = vsel %vm517, %v1041, -inf
        %1043 = vmax.xlane.f32.xlu0 %v1042
        %v1044 = vpop.xlane.xlu0 %1043
        %v1045 = vsub.f32 %v1041, %v1044
        %v1046 = vmul.f32 %v1045, 1.442695
        %v1047 = vpow.pop %v1046
        %v1048 = vsel %vm517, %v1047, 0.0
        %1049 = vadd.xlane.f32.xlu0 %v1048
        %v1050 = vpop.xlane.xlu0 %1049
        %v1051 = vrcp.pop %v1050
        %v1052 = vmul.f32 %v1047, %v1051
        %v1053 = vpack.c.bf16 %v1052, %v1052
        %1054 = vrot.lane.b32.xlu0 %v513, 40
        %v1055 = vpop.permute.xlu0 %1054
        %v1057 = vsel %vm517, %v1053, 0
        %v1060 = vsel %vm582, %v1055, 0
        %1062 = vmatprep.subr.bf16.mxu0 0
        %1063 = vmatpush1.bf16.msra.mxu0 0
        %1064 = vmatprep.subr.bf16.mxu0 0
        %1065 = vmatpush1.bf16.msra.mxu0 0
        %1066 = vmatprep.subr.bf16.mxu0 0
        %1067 = vmatpush1.bf16.msra.mxu0 0
        %1068 = vmatprep.subr.bf16.mxu0 0
        %1069 = vmatpush1.bf16.msra.mxu0 0
        %1070 = vmatprep.subr.bf16.mxu0 0
        %1071 = vmatpush1.bf16.msra.mxu0 0
        %1072 = vmatprep.subr.bf16.mxu0 0
        %1073 = vmatpush1.bf16.msra.mxu0 0
        %1074 = vmatprep.subr.bf16.mxu0 0
        %1075 = vmatpush1.bf16.msra.mxu0 0
        %1076 = vmatprep.subr.bf16.mxu0 0
        %1077 = vmatpush1.bf16.msra.mxu0 %v1060
        %1078 = vmatprep.subr.bf16.mxu0 0
        %1079 = vmatpush2.bf16.msra.mxu0 0
        %1080 = vmatprep.subr.bf16.mxu0 0
        %1081 = vmatpush2.bf16.msra.mxu0 0
        %1082 = vmatprep.subr.bf16.mxu0 0
        %1083 = vmatpush2.bf16.msra.mxu0 0
        %1084 = vmatprep.subr.bf16.mxu0 0
        %1085 = vmatpush2.bf16.msra.mxu0 0
        %1086 = vmatprep.subr.bf16.mxu0 0
        %1087 = vmatpush2.bf16.msra.mxu0 0
        %1088 = vmatprep.subr.bf16.mxu0 0
        %1089 = vmatpush2.bf16.msra.mxu0 0
        %1090 = vmatprep.subr.bf16.mxu0 0
        %1091 = vmatpush2.bf16.msra.mxu0 0
        %1092 = vmatprep.subr.bf16.mxu0 0
        %1093 = vmatpush2.bf16.msra.mxu0 0
        %1094 = vmatprep.mubr.bf16.mxu0 0
        %1095 = vmatmul.mubr.bf16.gmra.mxu0 %v1057
        %v1096 = vpop.f32.mrf.mxu0
        %v1097 = vadd.f32 0.0, %v1096
        %v1098 = vpop.f32.mrf.mxu0
        %v1099 = vpop.f32.mrf.mxu0
        %v1100 = vpop.f32.mrf.mxu0
        %1101 = vdwg.mxu0
        %v1102 = vpack.c.bf16 %v1097, %v1097
        %v1104 = vsel %vm517, %v1102, 0
        %v1107 = vsel %vm582, %v510, 0
        %1109 = vmatprep.subr.bf16.mxu0 0
        %1110 = vmatpush1.bf16.msra.mxu0 0
        %1111 = vmatprep.subr.bf16.mxu0 0
        %1112 = vmatpush1.bf16.msra.mxu0 0
        %1113 = vmatprep.subr.bf16.mxu0 0
        %1114 = vmatpush1.bf16.msra.mxu0 0
        %1115 = vmatprep.subr.bf16.mxu0 0
        %1116 = vmatpush1.bf16.msra.mxu0 0
        %1117 = vmatprep.subr.bf16.mxu0 0
        %1118 = vmatpush1.bf16.msra.mxu0 0
        %1119 = vmatprep.subr.bf16.mxu0 0
        %1120 = vmatpush1.bf16.msra.mxu0 0
        %1121 = vmatprep.subr.bf16.mxu0 0
        %1122 = vmatpush1.bf16.msra.mxu0 0
        %1123 = vmatprep.subr.bf16.mxu0 0
        %1124 = vmatpush1.bf16.msra.mxu0 %v1107
        %1125 = vmatprep.subr.bf16.mxu0 0
        %1126 = vmatpush2.bf16.msra.mxu0 0
        %1127 = vmatprep.subr.bf16.mxu0 0
        %1128 = vmatpush2.bf16.msra.mxu0 0
        %1129 = vmatprep.subr.bf16.mxu0 0
        %1130 = vmatpush2.bf16.msra.mxu0 0
        %1131 = vmatprep.subr.bf16.mxu0 0
        %1132 = vmatpush2.bf16.msra.mxu0 0
        %1133 = vmatprep.subr.bf16.mxu0 0
        %1134 = vmatpush2.bf16.msra.mxu0 0
        %1135 = vmatprep.subr.bf16.mxu0 0
        %1136 = vmatpush2.bf16.msra.mxu0 0
        %1137 = vmatprep.subr.bf16.mxu0 0
        %1138 = vmatpush2.bf16.msra.mxu0 0
        %1139 = vmatprep.subr.bf16.mxu0 0
        %1140 = vmatpush2.bf16.msra.mxu0 0
        %1141 = vmatprep.mubr.bf16.mxu0 0
        %1142 = vmatmul.mubr.bf16.gmra.mxu0 %v1104
        %v1143 = vpop.f32.mrf.mxu0
        %v1144 = vadd.f32 0.0, %v1143
        %v1145 = vpop.f32.mrf.mxu0
        %v1146 = vpop.f32.mrf.mxu0
        %v1147 = vpop.f32.mrf.mxu0
        %1148 = vdwg.mxu0
        %v1149 = vadd.f32 %v990, %v1144
        %v1150 = vadd.f32 %v410, %v1149
        %v1151 = vld [vmem:[%s5] sm:$0x1]
        %v1153 = vlaneseq
        %v1154 = vshrl.u32 %v1153, 7
        %v1155 = vsub.s32 0, %v1154
        %v1156 = vrot.slane %v1151, %v1155
        %v1158 = vadd.f32 %v1150, %v1156
        %v1159 = vld [vmem:[%s6] sm:$0x1]
        %v1160 = vld [vmem:[%s7] sm:$0x1]
        %v1161 = vsel %vm418, %v1158, 0.0
        %1162 = vadd.xlane.f32.xlu0 %v1161
        %v1163 = vpop.xlane.xlu0 %1162
        %v1164 = vmul.f32 %v1163, %v422
        %v1165 = vsub.f32 %v1158, %v1164
        %v1166 = vmul.f32 %v1165, %v1165
        %v1167 = vsel %vm418, %v1166, 0.0
        %1168 = vadd.xlane.f32.xlu0 %v1167
        %v1169 = vpop.xlane.xlu0 %1168
        %v1170 = vmul.f32 %v1169, %v422
        %v1171 = vadd.f32 %v1170, 1e-05
        %v1172 = vrsqrt.pop %v1171
        %v1173 = vmul.f32 %v1165, %v1172
        %v1175 = vlaneseq
        %v1176 = vshrl.u32 %v1175, 7
        %v1177 = vsub.s32 0, %v1176
        %v1178 = vrot.slane %v1159, %v1177
        %v1180 = vmul.f32 %v1173, %v1178
        %v1182 = vlaneseq
        %v1183 = vshrl.u32 %v1182, 7
        %v1184 = vsub.s32 0, %v1183
        %v1185 = vrot.slane %v1160, %v1184
        %v1187 = vadd.f32 %v1180, %v1185
        %v1188 = vpack.c.bf16 %v1187, %v1187
        %v1189 = vld [vmem:[%s8] sm:$0xf]
        %v1190 = vld [vmem:[%s8 + $0x4] sm:$0xf]
        %v1191 = vld [vmem:[%s8 + $0x8] sm:$0xf]
        %v1192 = vld [vmem:[%s8 + $0xc] sm:$0xf]
        %v1193 = vld [vmem:[%s9] sm:$0x1]
        %v1195 = vlaneseq
        %v1196 = vshrl.u32 %v1195, 7
        %v1197 = vsub.s32 0, %v1196
        %v1198 = vrot.slane %v1193, %v1197
        %v1204 = vunpack.c.l.b16 %v1189
        %v1205 = vunpack.c.l.b16 %v1190
        %v1206 = vunpack.c.l.b16 %v1191
        %v1207 = vunpack.c.l.b16 %v1192
        %v1208 = vpack.c.b16 %v1205, %v1204
        %v1209 = vpack.c.b16 %v1207, %v1206
        %v1213 = vsel %vm418, %v1188, 0
        %1215 = vmatprep.subr.bf16.mxu0 0
        %1216 = vmatpush1.bf16.msra.mxu0 0
        %1217 = vmatprep.subr.bf16.mxu0 0
        %1218 = vmatpush1.bf16.msra.mxu0 0
        %1219 = vmatprep.subr.bf16.mxu0 0
        %1220 = vmatpush1.bf16.msra.mxu0 0
        %1221 = vmatprep.subr.bf16.mxu0 0
        %1222 = vmatpush1.bf16.msra.mxu0 0
        %1223 = vmatprep.subr.bf16.mxu0 0
        %1224 = vmatpush1.bf16.msra.mxu0 0
        %1225 = vmatprep.subr.bf16.mxu0 0
        %1226 = vmatpush1.bf16.msra.mxu0 0
        %1227 = vmatprep.subr.bf16.mxu0 0
        %1228 = vmatpush1.bf16.msra.mxu0 %v1209
        %1229 = vmatprep.subr.bf16.mxu0 0
        %1230 = vmatpush1.bf16.msra.mxu0 %v1208
        %1231 = vmatprep.subr.bf16.mxu0 0
        %1232 = vmatpush2.bf16.msra.mxu0 0
        %1233 = vmatprep.subr.bf16.mxu0 0
        %1234 = vmatpush2.bf16.msra.mxu0 0
        %1235 = vmatprep.subr.bf16.mxu0 0
        %1236 = vmatpush2.bf16.msra.mxu0 0
        %1237 = vmatprep.subr.bf16.mxu0 0
        %1238 = vmatpush2.bf16.msra.mxu0 0
        %1239 = vmatprep.subr.bf16.mxu0 0
        %1240 = vmatpush2.bf16.msra.mxu0 0
        %1241 = vmatprep.subr.bf16.mxu0 0
        %1242 = vmatpush2.bf16.msra.mxu0 0
        %1243 = vmatprep.subr.bf16.mxu0 0
        %1244 = vmatpush2.bf16.msra.mxu0 0
        %1245 = vmatprep.subr.bf16.mxu0 0
        %1246 = vmatpush2.bf16.msra.mxu0 0
        %1247 = vmatprep.mubr.bf16.mxu0 0
        %1248 = vmatmul.mubr.bf16.gmra.mxu0 %v1213
        %v1249 = vpop.f32.mrf.mxu0
        %v1250 = vadd.f32 %v1198, %v1249
        %v1251 = vpop.f32.mrf.mxu0
        %v1252 = vpop.f32.mrf.mxu0
        %v1253 = vpop.f32.mrf.mxu0
        %1254 = vdwg.mxu0
        %v1255 = vmul.f32 %v1250, 0.5
        %v1256 = vmul.f32 %v1250, 0.70710677
        %v1257 = verf.f32.pop %v1256
        %v1258 = vadd.f32 %v1257, 1.0
        %v1259 = vmul.f32 %v1255, %v1258
        %v1260 = vpack.c.bf16 %v1259, %v1259
        %v1261 = vld [vmem:[%s10] sm:$0xf]
        %v1262 = vld [vmem:[%s10 + $0x4] sm:$0xf]
        %v1263 = vld [vmem:[%s10 + $0x8] sm:$0xf]
        %v1264 = vld [vmem:[%s10 + $0xc] sm:$0xf]
        %v1265 = vld [vmem:[%s10 + $0x10] sm:$0xf]
        %v1266 = vld [vmem:[%s10 + $0x14] sm:$0xf]
        %v1267 = vld [vmem:[%s10 + $0x18] sm:$0xf]
        %v1268 = vld [vmem:[%s10 + $0x1c] sm:$0xf]
        %v1269 = vld [vmem:[%s10 + $0x20] sm:$0xf]
        %v1270 = vld [vmem:[%s10 + $0x24] sm:$0xf]
        %v1271 = vld [vmem:[%s10 + $0x28] sm:$0xf]
        %v1272 = vld [vmem:[%s10 + $0x2c] sm:$0xf]
        %v1273 = vld [vmem:[%s10 + $0x30] sm:$0xf]
        %v1274 = vld [vmem:[%s10 + $0x34] sm:$0xf]
        %v1275 = vld [vmem:[%s10 + $0x38] sm:$0xf]
        %v1276 = vld [vmem:[%s10 + $0x3c] sm:$0xf]
        %v1277 = vld [vmem:[%s11] sm:$0x1]
        %v1279 = vlaneseq
        %v1280 = vshrl.u32 %v1279, 7
        %v1281 = vsub.s32 0, %v1280
        %v1282 = vrot.slane %v1277, %v1281
        %v1300 = vunpack.c.l.b16 %v1261
        %v1301 = vunpack.c.l.b16 %v1262
        %v1302 = vunpack.c.l.b16 %v1263
        %v1303 = vunpack.c.l.b16 %v1264
        %v1304 = vunpack.c.l.b16 %v1265
        %v1305 = vunpack.c.l.b16 %v1266
        %v1306 = vunpack.c.l.b16 %v1267
        %v1307 = vunpack.c.l.b16 %v1268
        %v1308 = vunpack.c.l.b16 %v1269
        %v1309 = vunpack.c.l.b16 %v1270
        %v1310 = vunpack.c.l.b16 %v1271
        %v1311 = vunpack.c.l.b16 %v1272
        %v1312 = vunpack.c.l.b16 %v1273
        %v1313 = vunpack.c.l.b16 %v1274
        %v1314 = vunpack.c.l.b16 %v1275
        %v1315 = vunpack.c.l.b16 %v1276
        %v1316 = vpack.c.b16 %v1301, %v1300
        %v1317 = vpack.c.b16 %v1303, %v1302
        %v1318 = vpack.c.b16 %v1305, %v1304
        %v1319 = vpack.c.b16 %v1307, %v1306
        %v1320 = vpack.c.b16 %v1309, %v1308
        %v1321 = vpack.c.b16 %v1311, %v1310
        %v1322 = vpack.c.b16 %v1313, %v1312
        %v1323 = vpack.c.b16 %v1315, %v1314
        %1332 = vmatprep.subr.bf16.mxu0 0
        %1333 = vmatpush1.bf16.msra.mxu0 %v1323
        %1334 = vmatprep.subr.bf16.mxu0 0
        %1335 = vmatpush1.bf16.msra.mxu0 %v1322
        %1336 = vmatprep.subr.bf16.mxu0 0
        %1337 = vmatpush1.bf16.msra.mxu0 %v1321
        %1338 = vmatprep.subr.bf16.mxu0 0
        %1339 = vmatpush1.bf16.msra.mxu0 %v1320
        %1340 = vmatprep.subr.bf16.mxu0 0
        %1341 = vmatpush1.bf16.msra.mxu0 %v1319
        %1342 = vmatprep.subr.bf16.mxu0 0
        %1343 = vmatpush1.bf16.msra.mxu0 %v1318
        %1344 = vmatprep.subr.bf16.mxu0 0
        %1345 = vmatpush1.bf16.msra.mxu0 %v1317
        %1346 = vmatprep.subr.bf16.mxu0 0
        %1347 = vmatpush1.bf16.msra.mxu0 %v1316
        %1348 = vmatprep.subr.bf16.mxu0 0
        %1349 = vmatpush2.bf16.msra.mxu0 0
        %1350 = vmatprep.subr.bf16.mxu0 0
        %1351 = vmatpush2.bf16.msra.mxu0 0
        %1352 = vmatprep.subr.bf16.mxu0 0
        %1353 = vmatpush2.bf16.msra.mxu0 0
        %1354 = vmatprep.subr.bf16.mxu0 0
        %1355 = vmatpush2.bf16.msra.mxu0 0
        %1356 = vmatprep.subr.bf16.mxu0 0
        %1357 = vmatpush2.bf16.msra.mxu0 0
        %1358 = vmatprep.subr.bf16.mxu0 0
        %1359 = vmatpush2.bf16.msra.mxu0 0
        %1360 = vmatprep.subr.bf16.mxu0 0
        %1361 = vmatpush2.bf16.msra.mxu0 0
        %1362 = vmatprep.subr.bf16.mxu0 0
        %1363 = vmatpush2.bf16.msra.mxu0 0
        %1364 = vmatprep.mubr.bf16.mxu0 0
        %1365 = vmatmul.mubr.bf16.gmra.mxu0 %v1260
        %v1366 = vpop.f32.mrf.mxu0
        %v1367 = vadd.f32 %v1282, %v1366
        %v1368 = vpop.f32.mrf.mxu0
        %v1369 = vpop.f32.mrf.mxu0
        %v1370 = vpop.f32.mrf.mxu0
        %1371 = vdwg.mxu0
        %v1372 = vadd.f32 %v1158, %v1367
        %1373 = vst.msk [vmem:[%s404] sm:$0xff] %vm418, %v1372
        %s1374 = sand.u32 %s291, 1
        %s1375 = scalar_lea.sflag [#allocation3], %s1374
        %s1376 = sand.u32 %s291, 1
        %s1377 = smul.addr %s1376, 8
        %s1378 = scalar_lea.vmem [#allocation2], %s1377
        // Predicated region
        $region69: #{tpu_custom_call.1} parent=67 // pred_check
          %p1379 = pneg %p301
        $region70: #{tpu_custom_call.1} parent=67 // pred_check_branch
          %1381 = sbr.rel (%p1379) target = $region72
        $region71: #{tpu_custom_call.1} parent=67 // pred_region
          %s1383 = ssub.s32 128, 128
          %1384 = vsyncadd %s1375, %s1383
          %s1385 = smul.addr %s26, 128
          %s1386 = scalar_lea.hbm %s12, %s1385
          %s1388 = sshll.u32 %s1378, 4
          %s1389 = int_to_ptr.vmem [resolvable:$true] %s1388
          %1391 = dma.vmem_to_hbm [thread:$0]  %s1389, 128, %s1386, %s1375
        $region72: #{tpu_custom_call.1} parent=67 // pred_fallthru
          _
      $region68: #{tpu_custom_call.1} parent=5 // pred_fallthru
        _
      %p1392 = scmp.le.s32.totalorder 2, %s21
      // Predicated region
      $region73: #{tpu_custom_call.1} parent=5 // pred_check
        %p1393 = pneg %p1392
      $region74: #{tpu_custom_call.1} parent=5 // pred_check_branch
        %1395 = sbr.rel (%p1393) target = $region76
      $region75: #{tpu_custom_call.1} parent=5 // pred_region
        %s1396 = ssub.s32 %s21, 2
        // Predicated region
        $region77: #{tpu_custom_call.1} parent=75 // pred_check
          %p1397 = pneg %p307
        $region78: #{tpu_custom_call.1} parent=75 // pred_check_branch
          %1399 = sbr.rel (%p1397) target = $region80
        $region79: #{tpu_custom_call.1} parent=75 // pred_region
          %s1400 = sand.u32 %s292, 1
          %s1401 = scalar_lea.sflag [#allocation3], %s1400
          %s1402 = sand.u32 %s292, 1
          %s1403 = smul.addr %s1402, 8
          %s1404 = scalar_lea.vmem [#allocation2], %s1403
          %1405 = dma.done %s1401, 128
        $region80: #{tpu_custom_call.1} parent=75 // pred_fallthru
          _
      $region76: #{tpu_custom_call.1} parent=5 // pred_fallthru
        _
    $region6: #{tpu_custom_call.1} parent=1 // loop_footer
      %s25 = sadd.s32 1, %s21
    $region7: #{tpu_custom_call.1} parent=1 // loop_footer_branch
      %20 = sbr.rel target = $region3
    $region8: #{tpu_custom_call.1} parent=1 // loop_exit
      _
    %1406 = vsyncpa [#allocation3], 1
    %s1407 = scalar_lea.sflag [#allocation3], 1
    %1408 = vsyncpa %s1407, 1

</llo_original>
